<compile_context>
chip_gen: v5e
topology: v5e:2x2
jax: 0.10.0
libtpu: 0.0.40
codegen_flags: <defaults>
</compile_context>

<pallas_src>
import functools

import jax
import jax.numpy as jnp
from jax.experimental import pallas as pl
from jax.experimental.pallas import tpu as pltpu


def _index_put_accum_kernel(idx_ref, nuniq_ref, in_hbm, val_ref, out_hbm,
                            row_buf, gather_sems, write_sems):
    # idx_ref     : SMEM (N_pad,) int32   unique row indices (padding -> 0)
    # nuniq_ref   : SMEM (1,)     int32   number of real (unique) rows
    # in_hbm      : HBM  (D0, C)  f32     aliased to out_hbm; never read here
    # val_ref     : VMEM (B,  C)  f32     pre-accumulated value block (auto-pipelined)
    # out_hbm     : HBM  (D0, C)  f32     aliased to the input
    # row_buf     : VMEM (B,  C)  f32     scratch for the gathered output rows
    # gather_sems : DMA sems (B,)
    # write_sems  : DMA sems (B,)
    del in_hbm  # same buffer as out_hbm via input_output_aliases

    B = row_buf.shape[0]
    base = pl.program_id(0) * B

    # ---- scalar reads first (before any DMA wait) --------------------------
    n_unique = nuniq_ref[0]
    rows = [idx_ref[base + b] for b in range(B)]

    # ---- gather the B touched output rows with overlapped DMAs -------------
    gathers = []
    for b in range(B):
        cp = pltpu.make_async_copy(out_hbm.at[pl.ds(rows[b], 1), :],
                                   row_buf.at[pl.ds(b, 1), :],
                                   gather_sems.at[b])
        cp.start()
        gathers.append(cp)
    for cp in gathers:
        cp.wait()

    # ---- one (B, C) VPU add against the auto-pipelined value block ---------
    row_buf[...] = row_buf[...] + val_ref[...]

    # ---- scatter the rows back.  Padding rows (global slot >= n_unique)
    # are skipped so a stale copy can never clobber a real update.  All real
    # writebacks are started first, then waited, so the stores overlap. ------
    for b in range(B):
        @pl.when(base + b < n_unique)
        def _start(b=b):
            pltpu.make_async_copy(row_buf.at[pl.ds(b, 1), :],
                                  out_hbm.at[pl.ds(rows[b], 1), :],
                                  write_sems.at[b]).start()
    for b in range(B):
        @pl.when(base + b < n_unique)
        def _wait(b=b):
            pltpu.make_async_copy(row_buf.at[pl.ds(b, 1), :],
                                  out_hbm.at[pl.ds(rows[b], 1), :],
                                  write_sems.at[b]).wait()


@functools.partial(jax.jit, static_argnums=(3,), donate_argnums=(0,))
def _index_put_jit(input_arr, index, value, block_rows):
    D0, C = input_arr.shape
    N = index.shape[0]
    B = block_rows
    assert N >= 1 and value.shape == (N, C)

    # Negative-index wrap + clamp, narrowed to int32 (avoids an unchecked
    # data-dependent HBM DMA offset; PyTorch would raise on true OOB).
    idx = index.astype(jnp.int32)
    idx = jnp.where(idx < 0, idx + D0, idx)
    idx = jnp.clip(idx, 0, D0 - 1)

    # ---- wrapper-side duplicate pre-reduction (vectorized in XLA) ----------
    # Sort indices, segment-sum the value rows of equal indices.  After this,
    # slots [0, n_unique) hold unique indices + their accumulated values; the
    # remaining slots are zero-valued padding pointing at row 0 (never written
    # back -> harmless).
    order = jnp.argsort(idx)
    idx_s = idx[order]
    val_s = value[order]
    is_new = jnp.concatenate([jnp.ones((1,), jnp.bool_), idx_s[1:] != idx_s[:-1]])
    seg = jnp.cumsum(is_new.astype(jnp.int32)) - 1                 # (N,)
    acc_val = jnp.zeros((N, C), value.dtype).at[seg].add(val_s)    # (N, C)
    uniq_idx = jnp.zeros((N,), jnp.int32).at[seg].set(idx_s)       # (N,)
    n_unique = jnp.reshape(seg[-1] + 1, (1,)).astype(jnp.int32)    # (1,)

    # Pad the slot count to a multiple of the per-step batch size B.
    num_blocks = (N + B - 1) // B
    n_pad = num_blocks * B
    if n_pad != N:
        acc_val = jnp.pad(acc_val, ((0, n_pad - N), (0, 0)))
        uniq_idx = jnp.pad(uniq_idx, ((0, n_pad - N),))

    grid_spec = pltpu.PrefetchScalarGridSpec(
        num_scalar_prefetch=2,                   # uniq_idx, n_unique -> SMEM
        grid=(num_blocks,),                      # B unique rows per grid step
        in_specs=[
            pl.BlockSpec(memory_space=pl.ANY),   # input (aliased to output, HBM)
            pl.BlockSpec((B, C), lambda g, idx_ref, n_ref: (g, 0)),  # values (VMEM, auto-pipelined)
        ],
        out_specs=pl.BlockSpec(memory_space=pl.ANY),
        scratch_shapes=[
            pltpu.VMEM((B, C), input_arr.dtype),   # gathered output rows
            pltpu.SemaphoreType.DMA((B,)),         # gather semaphores
            pltpu.SemaphoreType.DMA((B,)),         # writeback semaphores
        ],
    )

    return pl.pallas_call(
        _index_put_accum_kernel,
        out_shape=jax.ShapeDtypeStruct((D0, C), input_arr.dtype),
        grid_spec=grid_spec,
        # Flattened call args: 0=uniq_idx, 1=n_unique, 2=input_arr, 3=acc_val.
        input_output_aliases={2: 0},
        compiler_params=pltpu.CompilerParams(
            # Rows are unique after the wrapper-side dedup, so grid steps are
            # independent -> shardable across TensorCores (v7x).
            dimension_semantics=("parallel",),
        ),
    )(uniq_idx, n_unique, input_arr, acc_val)


def index_put_2d_float_accumulate(input_arr, index, value, block_rows=8):
    """out = input; out[index, :] += value  (accumulate=True, duplicates add).

    NOTE: `input_arr` is donated/aliased into the output; do not reuse it after
    the call.  `block_rows` should be a multiple of 8 (sublane alignment).
    """
    return _index_put_jit(input_arr, index, value, block_rows)


if __name__ == "__main__":
    key = jax.random.PRNGKey(0)
    k1, k2, k3 = jax.random.split(key, 3)

    # Shapes consistent with the torch-mlir e2e test (2-D float, 1-D index);
    # N > D0 guarantees duplicate indices so accumulate=True is exercised.
    D0, C = 10, 8
    N = 12

    input_arr = jax.random.normal(k1, (D0, C), dtype=jnp.float32)
    index = jax.random.randint(k2, (N,), 0, D0, dtype=jnp.int32)
    value = jax.random.normal(k3, (N, C), dtype=jnp.float32)

    # Pure-JAX reference, materialized BEFORE the kernel call because the
    # kernel donates/aliases `input_arr` into its output.
    ref = jax.block_until_ready(input_arr.at[index].add(value))

    out = index_put_2d_float_accumulate(input_arr, index, value)
    out = jax.block_until_ready(out)

    assert jnp.allclose(out, ref, rtol=1e-5, atol=1e-5), \
        "Pallas result mismatch vs reference"

    print("KERNEL_OK")
</pallas_src>

<mosaic_0001>
module attributes {stable_mosaic.version = 11 : i64} {
  func.func @_index_put_accum_kernel(%arg0: i32, %arg1: memref<16xi32, #tpu.memory_space<smem>>, %arg2: memref<1xi32, #tpu.memory_space<smem>>, %arg3: memref<10x8xf32, #tpu.memory_space<any>>, %arg4: memref<8x8xf32, #tpu.memory_space<vmem>>, %arg5: memref<10x8xf32, #tpu.memory_space<any>>, %arg6: memref<8x8xf32, #tpu.memory_space<vmem>>, %arg7: memref<8x!tpu.dma_semaphore, #tpu.memory_space<semaphore_mem>>, %arg8: memref<8x!tpu.dma_semaphore, #tpu.memory_space<semaphore_mem>>) attributes {dimension_semantics = [#tpu.dimension_semantics<parallel>], iteration_bounds = array<i64: 2>, scalar_prefetch = 2 : i64, scratch_operands = 3 : i64, tpu.core_type = #tpu.core_type<tc>, window_params = [{}, {transform_indices = @transform_1, window_bounds = array<i64: 8, 8>}, {}]} {
    %c8_i32 = arith.constant 8 : i32
    %0 = arith.muli %arg0, %c8_i32 : i32
    %c0 = arith.constant 0 : index
    %1 = memref.load %arg2[%c0] : memref<1xi32, #tpu.memory_space<smem>>
    %c0_i32 = arith.constant 0 : i32
    %2 = arith.addi %0, %c0_i32 : i32
    %3 = arith.index_cast %2 : i32 to index
    %4 = memref.load %arg1[%3] : memref<16xi32, #tpu.memory_space<smem>>
    %c1_i32 = arith.constant 1 : i32
    %5 = arith.addi %0, %c1_i32 : i32
    %6 = arith.index_cast %5 : i32 to index
    %7 = memref.load %arg1[%6] : memref<16xi32, #tpu.memory_space<smem>>
    %c2_i32 = arith.constant 2 : i32
    %8 = arith.addi %0, %c2_i32 : i32
    %9 = arith.index_cast %8 : i32 to index
    %10 = memref.load %arg1[%9] : memref<16xi32, #tpu.memory_space<smem>>
    %c3_i32 = arith.constant 3 : i32
    %11 = arith.addi %0, %c3_i32 : i32
    %12 = arith.index_cast %11 : i32 to index
    %13 = memref.load %arg1[%12] : memref<16xi32, #tpu.memory_space<smem>>
    %c4_i32 = arith.constant 4 : i32
    %14 = arith.addi %0, %c4_i32 : i32
    %15 = arith.index_cast %14 : i32 to index
    %16 = memref.load %arg1[%15] : memref<16xi32, #tpu.memory_space<smem>>
    %c5_i32 = arith.constant 5 : i32
    %17 = arith.addi %0, %c5_i32 : i32
    %18 = arith.index_cast %17 : i32 to index
    %19 = memref.load %arg1[%18] : memref<16xi32, #tpu.memory_space<smem>>
    %c6_i32 = arith.constant 6 : i32
    %20 = arith.addi %0, %c6_i32 : i32
    %21 = arith.index_cast %20 : i32 to index
    %22 = memref.load %arg1[%21] : memref<16xi32, #tpu.memory_space<smem>>
    %c7_i32 = arith.constant 7 : i32
    %23 = arith.addi %0, %c7_i32 : i32
    %24 = arith.index_cast %23 : i32 to index
    %25 = memref.load %arg1[%24] : memref<16xi32, #tpu.memory_space<smem>>
    %c0_i32_0 = arith.constant 0 : i32
    %c0_i32_1 = arith.constant 0 : i32
    %26 = tpu.memref_slice %arg5[%4, %c0_i32_1] : memref<10x8xf32, #tpu.memory_space<any>> -> memref<1x8xf32, #tpu.memory_space<any>>
    %c0_i32_2 = arith.constant 0 : i32
    %c0_i32_3 = arith.constant 0 : i32
    %27 = tpu.memref_slice %arg6[%c0_i32_2, %c0_i32_3] : memref<8x8xf32, #tpu.memory_space<vmem>> -> memref<1x8xf32, #tpu.memory_space<vmem>>
    %28 = tpu.memref_slice %arg7[%c0_i32_0] : memref<8x!tpu.dma_semaphore, #tpu.memory_space<semaphore_mem>> -> memref<1x!tpu.dma_semaphore, #tpu.memory_space<semaphore_mem>>
    %29 = tpu.memref_squeeze %28 : memref<1x!tpu.dma_semaphore, #tpu.memory_space<semaphore_mem>> -> memref<!tpu.dma_semaphore, #tpu.memory_space<semaphore_mem>>
    tpu.enqueue_dma source(%26 : memref<1x8xf32, #tpu.memory_space<any>>) target(%27 : memref<1x8xf32, #tpu.memory_space<vmem>>) target_semaphore(%29 : memref<!tpu.dma_semaphore, #tpu.memory_space<semaphore_mem>>)
    %c1_i32_4 = arith.constant 1 : i32
    %c0_i32_5 = arith.constant 0 : i32
    %30 = tpu.memref_slice %arg5[%7, %c0_i32_5] : memref<10x8xf32, #tpu.memory_space<any>> -> memref<1x8xf32, #tpu.memory_space<any>>
    %c1_i32_6 = arith.constant 1 : i32
    %c0_i32_7 = arith.constant 0 : i32
    %31 = tpu.memref_slice %arg6[%c1_i32_6, %c0_i32_7] : memref<8x8xf32, #tpu.memory_space<vmem>> -> memref<1x8xf32, #tpu.memory_space<vmem>>
    %32 = tpu.memref_slice %arg7[%c1_i32_4] : memref<8x!tpu.dma_semaphore, #tpu.memory_space<semaphore_mem>> -> memref<1x!tpu.dma_semaphore, #tpu.memory_space<semaphore_mem>>
    %33 = tpu.memref_squeeze %32 : memref<1x!tpu.dma_semaphore, #tpu.memory_space<semaphore_mem>> -> memref<!tpu.dma_semaphore, #tpu.memory_space<semaphore_mem>>
    tpu.enqueue_dma source(%30 : memref<1x8xf32, #tpu.memory_space<any>>) target(%31 : memref<1x8xf32, #tpu.memory_space<vmem>>) target_semaphore(%33 : memref<!tpu.dma_semaphore, #tpu.memory_space<semaphore_mem>>)
    %c2_i32_8 = arith.constant 2 : i32
    %c0_i32_9 = arith.constant 0 : i32
    %34 = tpu.memref_slice %arg5[%10, %c0_i32_9] : memref<10x8xf32, #tpu.memory_space<any>> -> memref<1x8xf32, #tpu.memory_space<any>>
    %c2_i32_10 = arith.constant 2 : i32
    %c0_i32_11 = arith.constant 0 : i32
    %35 = tpu.memref_slice %arg6[%c2_i32_10, %c0_i32_11] : memref<8x8xf32, #tpu.memory_space<vmem>> -> memref<1x8xf32, #tpu.memory_space<vmem>>
    %36 = tpu.memref_slice %arg7[%c2_i32_8] : memref<8x!tpu.dma_semaphore, #tpu.memory_space<semaphore_mem>> -> memref<1x!tpu.dma_semaphore, #tpu.memory_space<semaphore_mem>>
    %37 = tpu.memref_squeeze %36 : memref<1x!tpu.dma_semaphore, #tpu.memory_space<semaphore_mem>> -> memref<!tpu.dma_semaphore, #tpu.memory_space<semaphore_mem>>
    tpu.enqueue_dma source(%34 : memref<1x8xf32, #tpu.memory_space<any>>) target(%35 : memref<1x8xf32, #tpu.memory_space<vmem>>) target_semaphore(%37 : memref<!tpu.dma_semaphore, #tpu.memory_space<semaphore_mem>>)
    %c3_i32_12 = arith.constant 3 : i32
    %c0_i32_13 = arith.constant 0 : i32
    %38 = tpu.memref_slice %arg5[%13, %c0_i32_13] : memref<10x8xf32, #tpu.memory_space<any>> -> memref<1x8xf32, #tpu.memory_space<any>>
    %c3_i32_14 = arith.constant 3 : i32
    %c0_i32_15 = arith.constant 0 : i32
    %39 = tpu.memref_slice %arg6[%c3_i32_14, %c0_i32_15] : memref<8x8xf32, #tpu.memory_space<vmem>> -> memref<1x8xf32, #tpu.memory_space<vmem>>
    %40 = tpu.memref_slice %arg7[%c3_i32_12] : memref<8x!tpu.dma_semaphore, #tpu.memory_space<semaphore_mem>> -> memref<1x!tpu.dma_semaphore, #tpu.memory_space<semaphore_mem>>
    %41 = tpu.memref_squeeze %40 : memref<1x!tpu.dma_semaphore, #tpu.memory_space<semaphore_mem>> -> memref<!tpu.dma_semaphore, #tpu.memory_space<semaphore_mem>>
    tpu.enqueue_dma source(%38 : memref<1x8xf32, #tpu.memory_space<any>>) target(%39 : memref<1x8xf32, #tpu.memory_space<vmem>>) target_semaphore(%41 : memref<!tpu.dma_semaphore, #tpu.memory_space<semaphore_mem>>)
    %c4_i32_16 = arith.constant 4 : i32
    %c0_i32_17 = arith.constant 0 : i32
    %42 = tpu.memref_slice %arg5[%16, %c0_i32_17] : memref<10x8xf32, #tpu.memory_space<any>> -> memref<1x8xf32, #tpu.memory_space<any>>
    %c4_i32_18 = arith.constant 4 : i32
    %c0_i32_19 = arith.constant 0 : i32
    %43 = tpu.memref_slice %arg6[%c4_i32_18, %c0_i32_19] : memref<8x8xf32, #tpu.memory_space<vmem>> -> memref<1x8xf32, #tpu.memory_space<vmem>>
    %44 = tpu.memref_slice %arg7[%c4_i32_16] : memref<8x!tpu.dma_semaphore, #tpu.memory_space<semaphore_mem>> -> memref<1x!tpu.dma_semaphore, #tpu.memory_space<semaphore_mem>>
    %45 = tpu.memref_squeeze %44 : memref<1x!tpu.dma_semaphore, #tpu.memory_space<semaphore_mem>> -> memref<!tpu.dma_semaphore, #tpu.memory_space<semaphore_mem>>
    tpu.enqueue_dma source(%42 : memref<1x8xf32, #tpu.memory_space<any>>) target(%43 : memref<1x8xf32, #tpu.memory_space<vmem>>) target_semaphore(%45 : memref<!tpu.dma_semaphore, #tpu.memory_space<semaphore_mem>>)
    %c5_i32_20 = arith.constant 5 : i32
    %c0_i32_21 = arith.constant 0 : i32
    %46 = tpu.memref_slice %arg5[%19, %c0_i32_21] : memref<10x8xf32, #tpu.memory_space<any>> -> memref<1x8xf32, #tpu.memory_space<any>>
    %c5_i32_22 = arith.constant 5 : i32
    %c0_i32_23 = arith.constant 0 : i32
    %47 = tpu.memref_slice %arg6[%c5_i32_22, %c0_i32_23] : memref<8x8xf32, #tpu.memory_space<vmem>> -> memref<1x8xf32, #tpu.memory_space<vmem>>
    %48 = tpu.memref_slice %arg7[%c5_i32_20] : memref<8x!tpu.dma_semaphore, #tpu.memory_space<semaphore_mem>> -> memref<1x!tpu.dma_semaphore, #tpu.memory_space<semaphore_mem>>
    %49 = tpu.memref_squeeze %48 : memref<1x!tpu.dma_semaphore, #tpu.memory_space<semaphore_mem>> -> memref<!tpu.dma_semaphore, #tpu.memory_space<semaphore_mem>>
    tpu.enqueue_dma source(%46 : memref<1x8xf32, #tpu.memory_space<any>>) target(%47 : memref<1x8xf32, #tpu.memory_space<vmem>>) target_semaphore(%49 : memref<!tpu.dma_semaphore, #tpu.memory_space<semaphore_mem>>)
    %c6_i32_24 = arith.constant 6 : i32
    %c0_i32_25 = arith.constant 0 : i32
    %50 = tpu.memref_slice %arg5[%22, %c0_i32_25] : memref<10x8xf32, #tpu.memory_space<any>> -> memref<1x8xf32, #tpu.memory_space<any>>
    %c6_i32_26 = arith.constant 6 : i32
    %c0_i32_27 = arith.constant 0 : i32
    %51 = tpu.memref_slice %arg6[%c6_i32_26, %c0_i32_27] : memref<8x8xf32, #tpu.memory_space<vmem>> -> memref<1x8xf32, #tpu.memory_space<vmem>>
    %52 = tpu.memref_slice %arg7[%c6_i32_24] : memref<8x!tpu.dma_semaphore, #tpu.memory_space<semaphore_mem>> -> memref<1x!tpu.dma_semaphore, #tpu.memory_space<semaphore_mem>>
    %53 = tpu.memref_squeeze %52 : memref<1x!tpu.dma_semaphore, #tpu.memory_space<semaphore_mem>> -> memref<!tpu.dma_semaphore, #tpu.memory_space<semaphore_mem>>
    tpu.enqueue_dma source(%50 : memref<1x8xf32, #tpu.memory_space<any>>) target(%51 : memref<1x8xf32, #tpu.memory_space<vmem>>) target_semaphore(%53 : memref<!tpu.dma_semaphore, #tpu.memory_space<semaphore_mem>>)
    %c7_i32_28 = arith.constant 7 : i32
    %c0_i32_29 = arith.constant 0 : i32
    %54 = tpu.memref_slice %arg5[%25, %c0_i32_29] : memref<10x8xf32, #tpu.memory_space<any>> -> memref<1x8xf32, #tpu.memory_space<any>>
    %c7_i32_30 = arith.constant 7 : i32
    %c0_i32_31 = arith.constant 0 : i32
    %55 = tpu.memref_slice %arg6[%c7_i32_30, %c0_i32_31] : memref<8x8xf32, #tpu.memory_space<vmem>> -> memref<1x8xf32, #tpu.memory_space<vmem>>
    %56 = tpu.memref_slice %arg7[%c7_i32_28] : memref<8x!tpu.dma_semaphore, #tpu.memory_space<semaphore_mem>> -> memref<1x!tpu.dma_semaphore, #tpu.memory_space<semaphore_mem>>
    %57 = tpu.memref_squeeze %56 : memref<1x!tpu.dma_semaphore, #tpu.memory_space<semaphore_mem>> -> memref<!tpu.dma_semaphore, #tpu.memory_space<semaphore_mem>>
    tpu.enqueue_dma source(%54 : memref<1x8xf32, #tpu.memory_space<any>>) target(%55 : memref<1x8xf32, #tpu.memory_space<vmem>>) target_semaphore(%57 : memref<!tpu.dma_semaphore, #tpu.memory_space<semaphore_mem>>)
    %c0_i32_32 = arith.constant 0 : i32
    %c0_i32_33 = arith.constant 0 : i32
    %58 = tpu.memref_slice %arg5[%4, %c0_i32_33] : memref<10x8xf32, #tpu.memory_space<any>> -> memref<1x8xf32, #tpu.memory_space<any>>
    %c0_i32_34 = arith.constant 0 : i32
    %c0_i32_35 = arith.constant 0 : i32
    %59 = tpu.memref_slice %arg6[%c0_i32_34, %c0_i32_35] : memref<8x8xf32, #tpu.memory_space<vmem>> -> memref<1x8xf32, #tpu.memory_space<vmem>>
    %60 = tpu.memref_slice %arg7[%c0_i32_32] : memref<8x!tpu.dma_semaphore, #tpu.memory_space<semaphore_mem>> -> memref<1x!tpu.dma_semaphore, #tpu.memory_space<semaphore_mem>>
    %61 = tpu.memref_squeeze %60 : memref<1x!tpu.dma_semaphore, #tpu.memory_space<semaphore_mem>> -> memref<!tpu.dma_semaphore, #tpu.memory_space<semaphore_mem>>
    tpu.wait_dma2 semaphore(%61 : memref<!tpu.dma_semaphore, #tpu.memory_space<semaphore_mem>>) src(%58 : memref<1x8xf32, #tpu.memory_space<any>>) dst(%59 : memref<1x8xf32, #tpu.memory_space<vmem>>)
    %c1_i32_36 = arith.constant 1 : i32
    %c0_i32_37 = arith.constant 0 : i32
    %62 = tpu.memref_slice %arg5[%7, %c0_i32_37] : memref<10x8xf32, #tpu.memory_space<any>> -> memref<1x8xf32, #tpu.memory_space<any>>
    %c1_i32_38 = arith.constant 1 : i32
    %c0_i32_39 = arith.constant 0 : i32
    %63 = tpu.memref_slice %arg6[%c1_i32_38, %c0_i32_39] : memref<8x8xf32, #tpu.memory_space<vmem>> -> memref<1x8xf32, #tpu.memory_space<vmem>>
    %64 = tpu.memref_slice %arg7[%c1_i32_36] : memref<8x!tpu.dma_semaphore, #tpu.memory_space<semaphore_mem>> -> memref<1x!tpu.dma_semaphore, #tpu.memory_space<semaphore_mem>>
    %65 = tpu.memref_squeeze %64 : memref<1x!tpu.dma_semaphore, #tpu.memory_space<semaphore_mem>> -> memref<!tpu.dma_semaphore, #tpu.memory_space<semaphore_mem>>
    tpu.wait_dma2 semaphore(%65 : memref<!tpu.dma_semaphore, #tpu.memory_space<semaphore_mem>>) src(%62 : memref<1x8xf32, #tpu.memory_space<any>>) dst(%63 : memref<1x8xf32, #tpu.memory_space<vmem>>)
    %c2_i32_40 = arith.constant 2 : i32
    %c0_i32_41 = arith.constant 0 : i32
    %66 = tpu.memref_slice %arg5[%10, %c0_i32_41] : memref<10x8xf32, #tpu.memory_space<any>> -> memref<1x8xf32, #tpu.memory_space<any>>
    %c2_i32_42 = arith.constant 2 : i32
    %c0_i32_43 = arith.constant 0 : i32
    %67 = tpu.memref_slice %arg6[%c2_i32_42, %c0_i32_43] : memref<8x8xf32, #tpu.memory_space<vmem>> -> memref<1x8xf32, #tpu.memory_space<vmem>>
    %68 = tpu.memref_slice %arg7[%c2_i32_40] : memref<8x!tpu.dma_semaphore, #tpu.memory_space<semaphore_mem>> -> memref<1x!tpu.dma_semaphore, #tpu.memory_space<semaphore_mem>>
    %69 = tpu.memref_squeeze %68 : memref<1x!tpu.dma_semaphore, #tpu.memory_space<semaphore_mem>> -> memref<!tpu.dma_semaphore, #tpu.memory_space<semaphore_mem>>
    tpu.wait_dma2 semaphore(%69 : memref<!tpu.dma_semaphore, #tpu.memory_space<semaphore_mem>>) src(%66 : memref<1x8xf32, #tpu.memory_space<any>>) dst(%67 : memref<1x8xf32, #tpu.memory_space<vmem>>)
    %c3_i32_44 = arith.constant 3 : i32
    %c0_i32_45 = arith.constant 0 : i32
    %70 = tpu.memref_slice %arg5[%13, %c0_i32_45] : memref<10x8xf32, #tpu.memory_space<any>> -> memref<1x8xf32, #tpu.memory_space<any>>
    %c3_i32_46 = arith.constant 3 : i32
    %c0_i32_47 = arith.constant 0 : i32
    %71 = tpu.memref_slice %arg6[%c3_i32_46, %c0_i32_47] : memref<8x8xf32, #tpu.memory_space<vmem>> -> memref<1x8xf32, #tpu.memory_space<vmem>>
    %72 = tpu.memref_slice %arg7[%c3_i32_44] : memref<8x!tpu.dma_semaphore, #tpu.memory_space<semaphore_mem>> -> memref<1x!tpu.dma_semaphore, #tpu.memory_space<semaphore_mem>>
    %73 = tpu.memref_squeeze %72 : memref<1x!tpu.dma_semaphore, #tpu.memory_space<semaphore_mem>> -> memref<!tpu.dma_semaphore, #tpu.memory_space<semaphore_mem>>
    tpu.wait_dma2 semaphore(%73 : memref<!tpu.dma_semaphore, #tpu.memory_space<semaphore_mem>>) src(%70 : memref<1x8xf32, #tpu.memory_space<any>>) dst(%71 : memref<1x8xf32, #tpu.memory_space<vmem>>)
    %c4_i32_48 = arith.constant 4 : i32
    %c0_i32_49 = arith.constant 0 : i32
    %74 = tpu.memref_slice %arg5[%16, %c0_i32_49] : memref<10x8xf32, #tpu.memory_space<any>> -> memref<1x8xf32, #tpu.memory_space<any>>
    %c4_i32_50 = arith.constant 4 : i32
    %c0_i32_51 = arith.constant 0 : i32
    %75 = tpu.memref_slice %arg6[%c4_i32_50, %c0_i32_51] : memref<8x8xf32, #tpu.memory_space<vmem>> -> memref<1x8xf32, #tpu.memory_space<vmem>>
    %76 = tpu.memref_slice %arg7[%c4_i32_48] : memref<8x!tpu.dma_semaphore, #tpu.memory_space<semaphore_mem>> -> memref<1x!tpu.dma_semaphore, #tpu.memory_space<semaphore_mem>>
    %77 = tpu.memref_squeeze %76 : memref<1x!tpu.dma_semaphore, #tpu.memory_space<semaphore_mem>> -> memref<!tpu.dma_semaphore, #tpu.memory_space<semaphore_mem>>
    tpu.wait_dma2 semaphore(%77 : memref<!tpu.dma_semaphore, #tpu.memory_space<semaphore_mem>>) src(%74 : memref<1x8xf32, #tpu.memory_space<any>>) dst(%75 : memref<1x8xf32, #tpu.memory_space<vmem>>)
    %c5_i32_52 = arith.constant 5 : i32
    %c0_i32_53 = arith.constant 0 : i32
    %78 = tpu.memref_slice %arg5[%19, %c0_i32_53] : memref<10x8xf32, #tpu.memory_space<any>> -> memref<1x8xf32, #tpu.memory_space<any>>
    %c5_i32_54 = arith.constant 5 : i32
    %c0_i32_55 = arith.constant 0 : i32
    %79 = tpu.memref_slice %arg6[%c5_i32_54, %c0_i32_55] : memref<8x8xf32, #tpu.memory_space<vmem>> -> memref<1x8xf32, #tpu.memory_space<vmem>>
    %80 = tpu.memref_slice %arg7[%c5_i32_52] : memref<8x!tpu.dma_semaphore, #tpu.memory_space<semaphore_mem>> -> memref<1x!tpu.dma_semaphore, #tpu.memory_space<semaphore_mem>>
    %81 = tpu.memref_squeeze %80 : memref<1x!tpu.dma_semaphore, #tpu.memory_space<semaphore_mem>> -> memref<!tpu.dma_semaphore, #tpu.memory_space<semaphore_mem>>
    tpu.wait_dma2 semaphore(%81 : memref<!tpu.dma_semaphore, #tpu.memory_space<semaphore_mem>>) src(%78 : memref<1x8xf32, #tpu.memory_space<any>>) dst(%79 : memref<1x8xf32, #tpu.memory_space<vmem>>)
    %c6_i32_56 = arith.constant 6 : i32
    %c0_i32_57 = arith.constant 0 : i32
    %82 = tpu.memref_slice %arg5[%22, %c0_i32_57] : memref<10x8xf32, #tpu.memory_space<any>> -> memref<1x8xf32, #tpu.memory_space<any>>
    %c6_i32_58 = arith.constant 6 : i32
    %c0_i32_59 = arith.constant 0 : i32
    %83 = tpu.memref_slice %arg6[%c6_i32_58, %c0_i32_59] : memref<8x8xf32, #tpu.memory_space<vmem>> -> memref<1x8xf32, #tpu.memory_space<vmem>>
    %84 = tpu.memref_slice %arg7[%c6_i32_56] : memref<8x!tpu.dma_semaphore, #tpu.memory_space<semaphore_mem>> -> memref<1x!tpu.dma_semaphore, #tpu.memory_space<semaphore_mem>>
    %85 = tpu.memref_squeeze %84 : memref<1x!tpu.dma_semaphore, #tpu.memory_space<semaphore_mem>> -> memref<!tpu.dma_semaphore, #tpu.memory_space<semaphore_mem>>
    tpu.wait_dma2 semaphore(%85 : memref<!tpu.dma_semaphore, #tpu.memory_space<semaphore_mem>>) src(%82 : memref<1x8xf32, #tpu.memory_space<any>>) dst(%83 : memref<1x8xf32, #tpu.memory_space<vmem>>)
    %c7_i32_60 = arith.constant 7 : i32
    %c0_i32_61 = arith.constant 0 : i32
    %86 = tpu.memref_slice %arg5[%25, %c0_i32_61] : memref<10x8xf32, #tpu.memory_space<any>> -> memref<1x8xf32, #tpu.memory_space<any>>
    %c7_i32_62 = arith.constant 7 : i32
    %c0_i32_63 = arith.constant 0 : i32
    %87 = tpu.memref_slice %arg6[%c7_i32_62, %c0_i32_63] : memref<8x8xf32, #tpu.memory_space<vmem>> -> memref<1x8xf32, #tpu.memory_space<vmem>>
    %88 = tpu.memref_slice %arg7[%c7_i32_60] : memref<8x!tpu.dma_semaphore, #tpu.memory_space<semaphore_mem>> -> memref<1x!tpu.dma_semaphore, #tpu.memory_space<semaphore_mem>>
    %89 = tpu.memref_squeeze %88 : memref<1x!tpu.dma_semaphore, #tpu.memory_space<semaphore_mem>> -> memref<!tpu.dma_semaphore, #tpu.memory_space<semaphore_mem>>
    tpu.wait_dma2 semaphore(%89 : memref<!tpu.dma_semaphore, #tpu.memory_space<semaphore_mem>>) src(%86 : memref<1x8xf32, #tpu.memory_space<any>>) dst(%87 : memref<1x8xf32, #tpu.memory_space<vmem>>)
    %c0_64 = arith.constant 0 : index
    %c0_65 = arith.constant 0 : index
    %90 = vector.load %arg6[%c0_64, %c0_65] : memref<8x8xf32, #tpu.memory_space<vmem>>, vector<8x8xf32>
    %c0_66 = arith.constant 0 : index
    %c0_67 = arith.constant 0 : index
    %91 = vector.load %arg4[%c0_66, %c0_67] : memref<8x8xf32, #tpu.memory_space<vmem>>, vector<8x8xf32>
    %92 = arith.addf %90, %91 : vector<8x8xf32>
    %c0_68 = arith.constant 0 : index
    %c0_69 = arith.constant 0 : index
    %93 = vector.load %arg6[%c0_68, %c0_69] : memref<8x8xf32, #tpu.memory_space<vmem>>, vector<8x8xf32>
    tpu.vector_store %arg6[%c0_68, %c0_69], %92 {strides = array<i32>} : memref<8x8xf32, #tpu.memory_space<vmem>>, vector<8x8xf32>,
    %c0_i32_70 = arith.constant 0 : i32
    %94 = arith.addi %0, %c0_i32_70 : i32
    %95 = arith.cmpi slt, %94, %1 : i32
    %96 = arith.extui %95 : i1 to i32
    %c0_i32_71 = arith.constant 0 : i32
    %97 = arith.cmpi ne, %96, %c0_i32_71 : i32
    scf.if %97 {
      %c0_i32_102 = arith.constant 0 : i32
      %c0_i32_103 = arith.constant 0 : i32
      %c0_i32_104 = arith.constant 0 : i32
      %158 = tpu.memref_slice %arg6[%c0_i32_103, %c0_i32_104] : memref<8x8xf32, #tpu.memory_space<vmem>> -> memref<1x8xf32, #tpu.memory_space<vmem>>
      %c0_i32_105 = arith.constant 0 : i32
      %159 = tpu.memref_slice %arg5[%4, %c0_i32_105] : memref<10x8xf32, #tpu.memory_space<any>> -> memref<1x8xf32, #tpu.memory_space<any>>
      %160 = tpu.memref_slice %arg8[%c0_i32_102] : memref<8x!tpu.dma_semaphore, #tpu.memory_space<semaphore_mem>> -> memref<1x!tpu.dma_semaphore, #tpu.memory_space<semaphore_mem>>
      %161 = tpu.memref_squeeze %160 : memref<1x!tpu.dma_semaphore, #tpu.memory_space<semaphore_mem>> -> memref<!tpu.dma_semaphore, #tpu.memory_space<semaphore_mem>>
      tpu.enqueue_dma source(%158 : memref<1x8xf32, #tpu.memory_space<vmem>>) target(%159 : memref<1x8xf32, #tpu.memory_space<any>>) target_semaphore(%161 : memref<!tpu.dma_semaphore, #tpu.memory_space<semaphore_mem>>)
    } else {
    }
    %c1_i32_72 = arith.constant 1 : i32
    %98 = arith.addi %0, %c1_i32_72 : i32
    %99 = arith.cmpi slt, %98, %1 : i32
    %100 = arith.extui %99 : i1 to i32
    %c0_i32_73 = arith.constant 0 : i32
    %101 = arith.cmpi ne, %100, %c0_i32_73 : i32
    scf.if %101 {
      %c1_i32_102 = arith.constant 1 : i32
      %c1_i32_103 = arith.constant 1 : i32
      %c0_i32_104 = arith.constant 0 : i32
      %158 = tpu.memref_slice %arg6[%c1_i32_103, %c0_i32_104] : memref<8x8xf32, #tpu.memory_space<vmem>> -> memref<1x8xf32, #tpu.memory_space<vmem>>
      %c0_i32_105 = arith.constant 0 : i32
      %159 = tpu.memref_slice %arg5[%7, %c0_i32_105] : memref<10x8xf32, #tpu.memory_space<any>> -> memref<1x8xf32, #tpu.memory_space<any>>
      %160 = tpu.memref_slice %arg8[%c1_i32_102] : memref<8x!tpu.dma_semaphore, #tpu.memory_space<semaphore_mem>> -> memref<1x!tpu.dma_semaphore, #tpu.memory_space<semaphore_mem>>
      %161 = tpu.memref_squeeze %160 : memref<1x!tpu.dma_semaphore, #tpu.memory_space<semaphore_mem>> -> memref<!tpu.dma_semaphore, #tpu.memory_space<semaphore_mem>>
      tpu.enqueue_dma source(%158 : memref<1x8xf32, #tpu.memory_space<vmem>>) target(%159 : memref<1x8xf32, #tpu.memory_space<any>>) target_semaphore(%161 : memref<!tpu.dma_semaphore, #tpu.memory_space<semaphore_mem>>)
    } else {
    }
    %c2_i32_74 = arith.constant 2 : i32
    %102 = arith.addi %0, %c2_i32_74 : i32
    %103 = arith.cmpi slt, %102, %1 : i32
    %104 = arith.extui %103 : i1 to i32
    %c0_i32_75 = arith.constant 0 : i32
    %105 = arith.cmpi ne, %104, %c0_i32_75 : i32
    scf.if %105 {
      %c2_i32_102 = arith.constant 2 : i32
      %c2_i32_103 = arith.constant 2 : i32
      %c0_i32_104 = arith.constant 0 : i32
      %158 = tpu.memref_slice %arg6[%c2_i32_103, %c0_i32_104] : memref<8x8xf32, #tpu.memory_space<vmem>> -> memref<1x8xf32, #tpu.memory_space<vmem>>
      %c0_i32_105 = arith.constant 0 : i32
      %159 = tpu.memref_slice %arg5[%10, %c0_i32_105] : memref<10x8xf32, #tpu.memory_space<any>> -> memref<1x8xf32, #tpu.memory_space<any>>
      %160 = tpu.memref_slice %arg8[%c2_i32_102] : memref<8x!tpu.dma_semaphore, #tpu.memory_space<semaphore_mem>> -> memref<1x!tpu.dma_semaphore, #tpu.memory_space<semaphore_mem>>
      %161 = tpu.memref_squeeze %160 : memref<1x!tpu.dma_semaphore, #tpu.memory_space<semaphore_mem>> -> memref<!tpu.dma_semaphore, #tpu.memory_space<semaphore_mem>>
      tpu.enqueue_dma source(%158 : memref<1x8xf32, #tpu.memory_space<vmem>>) target(%159 : memref<1x8xf32, #tpu.memory_space<any>>) target_semaphore(%161 : memref<!tpu.dma_semaphore, #tpu.memory_space<semaphore_mem>>)
    } else {
    }
    %c3_i32_76 = arith.constant 3 : i32
    %106 = arith.addi %0, %c3_i32_76 : i32
    %107 = arith.cmpi slt, %106, %1 : i32
    %108 = arith.extui %107 : i1 to i32
    %c0_i32_77 = arith.constant 0 : i32
    %109 = arith.cmpi ne, %108, %c0_i32_77 : i32
    scf.if %109 {
      %c3_i32_102 = arith.constant 3 : i32
      %c3_i32_103 = arith.constant 3 : i32
      %c0_i32_104 = arith.constant 0 : i32
      %158 = tpu.memref_slice %arg6[%c3_i32_103, %c0_i32_104] : memref<8x8xf32, #tpu.memory_space<vmem>> -> memref<1x8xf32, #tpu.memory_space<vmem>>
      %c0_i32_105 = arith.constant 0 : i32
      %159 = tpu.memref_slice %arg5[%13, %c0_i32_105] : memref<10x8xf32, #tpu.memory_space<any>> -> memref<1x8xf32, #tpu.memory_space<any>>
      %160 = tpu.memref_slice %arg8[%c3_i32_102] : memref<8x!tpu.dma_semaphore, #tpu.memory_space<semaphore_mem>> -> memref<1x!tpu.dma_semaphore, #tpu.memory_space<semaphore_mem>>
      %161 = tpu.memref_squeeze %160 : memref<1x!tpu.dma_semaphore, #tpu.memory_space<semaphore_mem>> -> memref<!tpu.dma_semaphore, #tpu.memory_space<semaphore_mem>>
      tpu.enqueue_dma source(%158 : memref<1x8xf32, #tpu.memory_space<vmem>>) target(%159 : memref<1x8xf32, #tpu.memory_space<any>>) target_semaphore(%161 : memref<!tpu.dma_semaphore, #tpu.memory_space<semaphore_mem>>)
    } else {
    }
    %c4_i32_78 = arith.constant 4 : i32
    %110 = arith.addi %0, %c4_i32_78 : i32
    %111 = arith.cmpi slt, %110, %1 : i32
    %112 = arith.extui %111 : i1 to i32
    %c0_i32_79 = arith.constant 0 : i32
    %113 = arith.cmpi ne, %112, %c0_i32_79 : i32
    scf.if %113 {
      %c4_i32_102 = arith.constant 4 : i32
      %c4_i32_103 = arith.constant 4 : i32
      %c0_i32_104 = arith.constant 0 : i32
      %158 = tpu.memref_slice %arg6[%c4_i32_103, %c0_i32_104] : memref<8x8xf32, #tpu.memory_space<vmem>> -> memref<1x8xf32, #tpu.memory_space<vmem>>
      %c0_i32_105 = arith.constant 0 : i32
      %159 = tpu.memref_slice %arg5[%16, %c0_i32_105] : memref<10x8xf32, #tpu.memory_space<any>> -> memref<1x8xf32, #tpu.memory_space<any>>
      %160 = tpu.memref_slice %arg8[%c4_i32_102] : memref<8x!tpu.dma_semaphore, #tpu.memory_space<semaphore_mem>> -> memref<1x!tpu.dma_semaphore, #tpu.memory_space<semaphore_mem>>
      %161 = tpu.memref_squeeze %160 : memref<1x!tpu.dma_semaphore, #tpu.memory_space<semaphore_mem>> -> memref<!tpu.dma_semaphore, #tpu.memory_space<semaphore_mem>>
      tpu.enqueue_dma source(%158 : memref<1x8xf32, #tpu.memory_space<vmem>>) target(%159 : memref<1x8xf32, #tpu.memory_space<any>>) target_semaphore(%161 : memref<!tpu.dma_semaphore, #tpu.memory_space<semaphore_mem>>)
    } else {
    }
    %c5_i32_80 = arith.constant 5 : i32
    %114 = arith.addi %0, %c5_i32_80 : i32
    %115 = arith.cmpi slt, %114, %1 : i32
    %116 = arith.extui %115 : i1 to i32
    %c0_i32_81 = arith.constant 0 : i32
    %117 = arith.cmpi ne, %116, %c0_i32_81 : i32
    scf.if %117 {
      %c5_i32_102 = arith.constant 5 : i32
      %c5_i32_103 = arith.constant 5 : i32
      %c0_i32_104 = arith.constant 0 : i32
      %158 = tpu.memref_slice %arg6[%c5_i32_103, %c0_i32_104] : memref<8x8xf32, #tpu.memory_space<vmem>> -> memref<1x8xf32, #tpu.memory_space<vmem>>
      %c0_i32_105 = arith.constant 0 : i32
      %159 = tpu.memref_slice %arg5[%19, %c0_i32_105] : memref<10x8xf32, #tpu.memory_space<any>> -> memref<1x8xf32, #tpu.memory_space<any>>
      %160 = tpu.memref_slice %arg8[%c5_i32_102] : memref<8x!tpu.dma_semaphore, #tpu.memory_space<semaphore_mem>> -> memref<1x!tpu.dma_semaphore, #tpu.memory_space<semaphore_mem>>
      %161 = tpu.memref_squeeze %160 : memref<1x!tpu.dma_semaphore, #tpu.memory_space<semaphore_mem>> -> memref<!tpu.dma_semaphore, #tpu.memory_space<semaphore_mem>>
      tpu.enqueue_dma source(%158 : memref<1x8xf32, #tpu.memory_space<vmem>>) target(%159 : memref<1x8xf32, #tpu.memory_space<any>>) target_semaphore(%161 : memref<!tpu.dma_semaphore, #tpu.memory_space<semaphore_mem>>)
    } else {
    }
    %c6_i32_82 = arith.constant 6 : i32
    %118 = arith.addi %0, %c6_i32_82 : i32
    %119 = arith.cmpi slt, %118, %1 : i32
    %120 = arith.extui %119 : i1 to i32
    %c0_i32_83 = arith.constant 0 : i32
    %121 = arith.cmpi ne, %120, %c0_i32_83 : i32
    scf.if %121 {
      %c6_i32_102 = arith.constant 6 : i32
      %c6_i32_103 = arith.constant 6 : i32
      %c0_i32_104 = arith.constant 0 : i32
      %158 = tpu.memref_slice %arg6[%c6_i32_103, %c0_i32_104] : memref<8x8xf32, #tpu.memory_space<vmem>> -> memref<1x8xf32, #tpu.memory_space<vmem>>
      %c0_i32_105 = arith.constant 0 : i32
      %159 = tpu.memref_slice %arg5[%22, %c0_i32_105] : memref<10x8xf32, #tpu.memory_space<any>> -> memref<1x8xf32, #tpu.memory_space<any>>
      %160 = tpu.memref_slice %arg8[%c6_i32_102] : memref<8x!tpu.dma_semaphore, #tpu.memory_space<semaphore_mem>> -> memref<1x!tpu.dma_semaphore, #tpu.memory_space<semaphore_mem>>
      %161 = tpu.memref_squeeze %160 : memref<1x!tpu.dma_semaphore, #tpu.memory_space<semaphore_mem>> -> memref<!tpu.dma_semaphore, #tpu.memory_space<semaphore_mem>>
      tpu.enqueue_dma source(%158 : memref<1x8xf32, #tpu.memory_space<vmem>>) target(%159 : memref<1x8xf32, #tpu.memory_space<any>>) target_semaphore(%161 : memref<!tpu.dma_semaphore, #tpu.memory_space<semaphore_mem>>)
    } else {
    }
    %c7_i32_84 = arith.constant 7 : i32
    %122 = arith.addi %0, %c7_i32_84 : i32
    %123 = arith.cmpi slt, %122, %1 : i32
    %124 = arith.extui %123 : i1 to i32
    %c0_i32_85 = arith.constant 0 : i32
    %125 = arith.cmpi ne, %124, %c0_i32_85 : i32
    scf.if %125 {
      %c7_i32_102 = arith.constant 7 : i32
      %c7_i32_103 = arith.constant 7 : i32
      %c0_i32_104 = arith.constant 0 : i32
      %158 = tpu.memref_slice %arg6[%c7_i32_103, %c0_i32_104] : memref<8x8xf32, #tpu.memory_space<vmem>> -> memref<1x8xf32, #tpu.memory_space<vmem>>
      %c0_i32_105 = arith.constant 0 : i32
      %159 = tpu.memref_slice %arg5[%25, %c0_i32_105] : memref<10x8xf32, #tpu.memory_space<any>> -> memref<1x8xf32, #tpu.memory_space<any>>
      %160 = tpu.memref_slice %arg8[%c7_i32_102] : memref<8x!tpu.dma_semaphore, #tpu.memory_space<semaphore_mem>> -> memref<1x!tpu.dma_semaphore, #tpu.memory_space<semaphore_mem>>
      %161 = tpu.memref_squeeze %160 : memref<1x!tpu.dma_semaphore, #tpu.memory_space<semaphore_mem>> -> memref<!tpu.dma_semaphore, #tpu.memory_space<semaphore_mem>>
      tpu.enqueue_dma source(%158 : memref<1x8xf32, #tpu.memory_space<vmem>>) target(%159 : memref<1x8xf32, #tpu.memory_space<any>>) target_semaphore(%161 : memref<!tpu.dma_semaphore, #tpu.memory_space<semaphore_mem>>)
    } else {
    }
    %c0_i32_86 = arith.constant 0 : i32
    %126 = arith.addi %0, %c0_i32_86 : i32
    %127 = arith.cmpi slt, %126, %1 : i32
    %128 = arith.extui %127 : i1 to i32
    %c0_i32_87 = arith.constant 0 : i32
    %129 = arith.cmpi ne, %128, %c0_i32_87 : i32
    scf.if %129 {
      %c0_i32_102 = arith.constant 0 : i32
      %c0_i32_103 = arith.constant 0 : i32
      %c0_i32_104 = arith.constant 0 : i32
      %158 = tpu.memref_slice %arg6[%c0_i32_103, %c0_i32_104] : memref<8x8xf32, #tpu.memory_space<vmem>> -> memref<1x8xf32, #tpu.memory_space<vmem>>
      %c0_i32_105 = arith.constant 0 : i32
      %159 = tpu.memref_slice %arg5[%4, %c0_i32_105] : memref<10x8xf32, #tpu.memory_space<any>> -> memref<1x8xf32, #tpu.memory_space<any>>
      %160 = tpu.memref_slice %arg8[%c0_i32_102] : memref<8x!tpu.dma_semaphore, #tpu.memory_space<semaphore_mem>> -> memref<1x!tpu.dma_semaphore, #tpu.memory_space<semaphore_mem>>
      %161 = tpu.memref_squeeze %160 : memref<1x!tpu.dma_semaphore, #tpu.memory_space<semaphore_mem>> -> memref<!tpu.dma_semaphore, #tpu.memory_space<semaphore_mem>>
      tpu.wait_dma2 semaphore(%161 : memref<!tpu.dma_semaphore, #tpu.memory_space<semaphore_mem>>) src(%158 : memref<1x8xf32, #tpu.memory_space<vmem>>) dst(%159 : memref<1x8xf32, #tpu.memory_space<any>>)
    } else {
    }
    %c1_i32_88 = arith.constant 1 : i32
    %130 = arith.addi %0, %c1_i32_88 : i32
    %131 = arith.cmpi slt, %130, %1 : i32
    %132 = arith.extui %131 : i1 to i32
    %c0_i32_89 = arith.constant 0 : i32
    %133 = arith.cmpi ne, %132, %c0_i32_89 : i32
    scf.if %133 {
      %c1_i32_102 = arith.constant 1 : i32
      %c1_i32_103 = arith.constant 1 : i32
      %c0_i32_104 = arith.constant 0 : i32
      %158 = tpu.memref_slice %arg6[%c1_i32_103, %c0_i32_104] : memref<8x8xf32, #tpu.memory_space<vmem>> -> memref<1x8xf32, #tpu.memory_space<vmem>>
      %c0_i32_105 = arith.constant 0 : i32
      %159 = tpu.memref_slice %arg5[%7, %c0_i32_105] : memref<10x8xf32, #tpu.memory_space<any>> -> memref<1x8xf32, #tpu.memory_space<any>>
      %160 = tpu.memref_slice %arg8[%c1_i32_102] : memref<8x!tpu.dma_semaphore, #tpu.memory_space<semaphore_mem>> -> memref<1x!tpu.dma_semaphore, #tpu.memory_space<semaphore_mem>>
      %161 = tpu.memref_squeeze %160 : memref<1x!tpu.dma_semaphore, #tpu.memory_space<semaphore_mem>> -> memref<!tpu.dma_semaphore, #tpu.memory_space<semaphore_mem>>
      tpu.wait_dma2 semaphore(%161 : memref<!tpu.dma_semaphore, #tpu.memory_space<semaphore_mem>>) src(%158 : memref<1x8xf32, #tpu.memory_space<vmem>>) dst(%159 : memref<1x8xf32, #tpu.memory_space<any>>)
    } else {
    }
    %c2_i32_90 = arith.constant 2 : i32
    %134 = arith.addi %0, %c2_i32_90 : i32
    %135 = arith.cmpi slt, %134, %1 : i32
    %136 = arith.extui %135 : i1 to i32
    %c0_i32_91 = arith.constant 0 : i32
    %137 = arith.cmpi ne, %136, %c0_i32_91 : i32
    scf.if %137 {
      %c2_i32_102 = arith.constant 2 : i32
      %c2_i32_103 = arith.constant 2 : i32
      %c0_i32_104 = arith.constant 0 : i32
      %158 = tpu.memref_slice %arg6[%c2_i32_103, %c0_i32_104] : memref<8x8xf32, #tpu.memory_space<vmem>> -> memref<1x8xf32, #tpu.memory_space<vmem>>
      %c0_i32_105 = arith.constant 0 : i32
      %159 = tpu.memref_slice %arg5[%10, %c0_i32_105] : memref<10x8xf32, #tpu.memory_space<any>> -> memref<1x8xf32, #tpu.memory_space<any>>
      %160 = tpu.memref_slice %arg8[%c2_i32_102] : memref<8x!tpu.dma_semaphore, #tpu.memory_space<semaphore_mem>> -> memref<1x!tpu.dma_semaphore, #tpu.memory_space<semaphore_mem>>
      %161 = tpu.memref_squeeze %160 : memref<1x!tpu.dma_semaphore, #tpu.memory_space<semaphore_mem>> -> memref<!tpu.dma_semaphore, #tpu.memory_space<semaphore_mem>>
      tpu.wait_dma2 semaphore(%161 : memref<!tpu.dma_semaphore, #tpu.memory_space<semaphore_mem>>) src(%158 : memref<1x8xf32, #tpu.memory_space<vmem>>) dst(%159 : memref<1x8xf32, #tpu.memory_space<any>>)
    } else {
    }
    %c3_i32_92 = arith.constant 3 : i32
    %138 = arith.addi %0, %c3_i32_92 : i32
    %139 = arith.cmpi slt, %138, %1 : i32
    %140 = arith.extui %139 : i1 to i32
    %c0_i32_93 = arith.constant 0 : i32
    %141 = arith.cmpi ne, %140, %c0_i32_93 : i32
    scf.if %141 {
      %c3_i32_102 = arith.constant 3 : i32
      %c3_i32_103 = arith.constant 3 : i32
      %c0_i32_104 = arith.constant 0 : i32
      %158 = tpu.memref_slice %arg6[%c3_i32_103, %c0_i32_104] : memref<8x8xf32, #tpu.memory_space<vmem>> -> memref<1x8xf32, #tpu.memory_space<vmem>>
      %c0_i32_105 = arith.constant 0 : i32
      %159 = tpu.memref_slice %arg5[%13, %c0_i32_105] : memref<10x8xf32, #tpu.memory_space<any>> -> memref<1x8xf32, #tpu.memory_space<any>>
      %160 = tpu.memref_slice %arg8[%c3_i32_102] : memref<8x!tpu.dma_semaphore, #tpu.memory_space<semaphore_mem>> -> memref<1x!tpu.dma_semaphore, #tpu.memory_space<semaphore_mem>>
      %161 = tpu.memref_squeeze %160 : memref<1x!tpu.dma_semaphore, #tpu.memory_space<semaphore_mem>> -> memref<!tpu.dma_semaphore, #tpu.memory_space<semaphore_mem>>
      tpu.wait_dma2 semaphore(%161 : memref<!tpu.dma_semaphore, #tpu.memory_space<semaphore_mem>>) src(%158 : memref<1x8xf32, #tpu.memory_space<vmem>>) dst(%159 : memref<1x8xf32, #tpu.memory_space<any>>)
    } else {
    }
    %c4_i32_94 = arith.constant 4 : i32
    %142 = arith.addi %0, %c4_i32_94 : i32
    %143 = arith.cmpi slt, %142, %1 : i32
    %144 = arith.extui %143 : i1 to i32
    %c0_i32_95 = arith.constant 0 : i32
    %145 = arith.cmpi ne, %144, %c0_i32_95 : i32
    scf.if %145 {
      %c4_i32_102 = arith.constant 4 : i32
      %c4_i32_103 = arith.constant 4 : i32
      %c0_i32_104 = arith.constant 0 : i32
      %158 = tpu.memref_slice %arg6[%c4_i32_103, %c0_i32_104] : memref<8x8xf32, #tpu.memory_space<vmem>> -> memref<1x8xf32, #tpu.memory_space<vmem>>
      %c0_i32_105 = arith.constant 0 : i32
      %159 = tpu.memref_slice %arg5[%16, %c0_i32_105] : memref<10x8xf32, #tpu.memory_space<any>> -> memref<1x8xf32, #tpu.memory_space<any>>
      %160 = tpu.memref_slice %arg8[%c4_i32_102] : memref<8x!tpu.dma_semaphore, #tpu.memory_space<semaphore_mem>> -> memref<1x!tpu.dma_semaphore, #tpu.memory_space<semaphore_mem>>
      %161 = tpu.memref_squeeze %160 : memref<1x!tpu.dma_semaphore, #tpu.memory_space<semaphore_mem>> -> memref<!tpu.dma_semaphore, #tpu.memory_space<semaphore_mem>>
      tpu.wait_dma2 semaphore(%161 : memref<!tpu.dma_semaphore, #tpu.memory_space<semaphore_mem>>) src(%158 : memref<1x8xf32, #tpu.memory_space<vmem>>) dst(%159 : memref<1x8xf32, #tpu.memory_space<any>>)
    } else {
    }
    %c5_i32_96 = arith.constant 5 : i32
    %146 = arith.addi %0, %c5_i32_96 : i32
    %147 = arith.cmpi slt, %146, %1 : i32
    %148 = arith.extui %147 : i1 to i32
    %c0_i32_97 = arith.constant 0 : i32
    %149 = arith.cmpi ne, %148, %c0_i32_97 : i32
    scf.if %149 {
      %c5_i32_102 = arith.constant 5 : i32
      %c5_i32_103 = arith.constant 5 : i32
      %c0_i32_104 = arith.constant 0 : i32
      %158 = tpu.memref_slice %arg6[%c5_i32_103, %c0_i32_104] : memref<8x8xf32, #tpu.memory_space<vmem>> -> memref<1x8xf32, #tpu.memory_space<vmem>>
      %c0_i32_105 = arith.constant 0 : i32
      %159 = tpu.memref_slice %arg5[%19, %c0_i32_105] : memref<10x8xf32, #tpu.memory_space<any>> -> memref<1x8xf32, #tpu.memory_space<any>>
      %160 = tpu.memref_slice %arg8[%c5_i32_102] : memref<8x!tpu.dma_semaphore, #tpu.memory_space<semaphore_mem>> -> memref<1x!tpu.dma_semaphore, #tpu.memory_space<semaphore_mem>>
      %161 = tpu.memref_squeeze %160 : memref<1x!tpu.dma_semaphore, #tpu.memory_space<semaphore_mem>> -> memref<!tpu.dma_semaphore, #tpu.memory_space<semaphore_mem>>
      tpu.wait_dma2 semaphore(%161 : memref<!tpu.dma_semaphore, #tpu.memory_space<semaphore_mem>>) src(%158 : memref<1x8xf32, #tpu.memory_space<vmem>>) dst(%159 : memref<1x8xf32, #tpu.memory_space<any>>)
    } else {
    }
    %c6_i32_98 = arith.constant 6 : i32
    %150 = arith.addi %0, %c6_i32_98 : i32
    %151 = arith.cmpi slt, %150, %1 : i32
    %152 = arith.extui %151 : i1 to i32
    %c0_i32_99 = arith.constant 0 : i32
    %153 = arith.cmpi ne, %152, %c0_i32_99 : i32
    scf.if %153 {
      %c6_i32_102 = arith.constant 6 : i32
      %c6_i32_103 = arith.constant 6 : i32
      %c0_i32_104 = arith.constant 0 : i32
      %158 = tpu.memref_slice %arg6[%c6_i32_103, %c0_i32_104] : memref<8x8xf32, #tpu.memory_space<vmem>> -> memref<1x8xf32, #tpu.memory_space<vmem>>
      %c0_i32_105 = arith.constant 0 : i32
      %159 = tpu.memref_slice %arg5[%22, %c0_i32_105] : memref<10x8xf32, #tpu.memory_space<any>> -> memref<1x8xf32, #tpu.memory_space<any>>
      %160 = tpu.memref_slice %arg8[%c6_i32_102] : memref<8x!tpu.dma_semaphore, #tpu.memory_space<semaphore_mem>> -> memref<1x!tpu.dma_semaphore, #tpu.memory_space<semaphore_mem>>
      %161 = tpu.memref_squeeze %160 : memref<1x!tpu.dma_semaphore, #tpu.memory_space<semaphore_mem>> -> memref<!tpu.dma_semaphore, #tpu.memory_space<semaphore_mem>>
      tpu.wait_dma2 semaphore(%161 : memref<!tpu.dma_semaphore, #tpu.memory_space<semaphore_mem>>) src(%158 : memref<1x8xf32, #tpu.memory_space<vmem>>) dst(%159 : memref<1x8xf32, #tpu.memory_space<any>>)
    } else {
    }
    %c7_i32_100 = arith.constant 7 : i32
    %154 = arith.addi %0, %c7_i32_100 : i32
    %155 = arith.cmpi slt, %154, %1 : i32
    %156 = arith.extui %155 : i1 to i32
    %c0_i32_101 = arith.constant 0 : i32
    %157 = arith.cmpi ne, %156, %c0_i32_101 : i32
    scf.if %157 {
      %c7_i32_102 = arith.constant 7 : i32
      %c7_i32_103 = arith.constant 7 : i32
      %c0_i32_104 = arith.constant 0 : i32
      %158 = tpu.memref_slice %arg6[%c7_i32_103, %c0_i32_104] : memref<8x8xf32, #tpu.memory_space<vmem>> -> memref<1x8xf32, #tpu.memory_space<vmem>>
      %c0_i32_105 = arith.constant 0 : i32
      %159 = tpu.memref_slice %arg5[%25, %c0_i32_105] : memref<10x8xf32, #tpu.memory_space<any>> -> memref<1x8xf32, #tpu.memory_space<any>>
      %160 = tpu.memref_slice %arg8[%c7_i32_102] : memref<8x!tpu.dma_semaphore, #tpu.memory_space<semaphore_mem>> -> memref<1x!tpu.dma_semaphore, #tpu.memory_space<semaphore_mem>>
      %161 = tpu.memref_squeeze %160 : memref<1x!tpu.dma_semaphore, #tpu.memory_space<semaphore_mem>> -> memref<!tpu.dma_semaphore, #tpu.memory_space<semaphore_mem>>
      tpu.wait_dma2 semaphore(%161 : memref<!tpu.dma_semaphore, #tpu.memory_space<semaphore_mem>>) src(%158 : memref<1x8xf32, #tpu.memory_space<vmem>>) dst(%159 : memref<1x8xf32, #tpu.memory_space<any>>)
    } else {
    }
    return
  }
  func.func @transform_1(%arg0: i32, %arg1: memref<16xi32, #tpu.memory_space<smem>>, %arg2: memref<1xi32, #tpu.memory_space<smem>>) -> (i32, i32) {
    %c0_i32 = arith.constant 0 : i32
    %c0_i32_0 = arith.constant 0 : i32
    return %arg0, %c0_i32 : i32, i32
  }
}

</mosaic_0001>

<llo_original>
// kernel: _index_put_jit.1
$region0: #{_index_put_jit.1}
  #allocation0 [shape = 'u32[]', space=smem, size = 0x4, offset = 0x4, fixed_abs, tag = 'smem constant byte address 0x4 - core index']
  #allocation1 [shape = 'u32[72,128]{1,0:T(1,128)}', space=vmem, size = 0x9000, scoped, tag = 'internal scratch']
  #allocation2 [shape = 'f32[8,8]{1,0:T(8,128)}', space=vmem, size = 0x1000, scoped, tag = 'scratch operand']
  #allocation3 [shape = 's32[8]{0}', space=sflag, size = 0x20, scoped, tag = 'scratch operand']
  #allocation4 [shape = 's32[8]{0}', space=sflag, size = 0x20, scoped, tag = 'scratch operand']
  #allocation5 [shape = 's32[1]{0}', space=sflag, size = 0x4, scoped, tag = 'scoped memory for _index_put_jit.1']
  #allocation6 [shape = 'u8[512]{0}', space=smem, size = 0x200, scoped, tag = 'prefetched SMEM operand 0']
  #allocation7 [shape = 's32[1]{0:T(128)S(6)}', space=smem, size = 0x200, scoped, tag = 'prefetched SMEM operand 1']
  #allocation8 [shape = 's32[]', space=sflag, size = 0x4, offset = 0, fixed_abs, tag = 'sflag constant byte address 0x0 - dummy sync flag']
  #allocation9 [shape = 's32[]', space=sflag, size = 0x4, offset = 0, fixed_abs, tag = 'sflag constant byte address 0x0 - dummy sync flag']
  #allocation10 [shape = 's32[]', space=sflag, size = 0x4, offset = 0, fixed_abs, tag = 'sflag constant byte address 0x0 - dummy sync flag']
  #allocation11 [shape = 's32[]', space=sflag, size = 0x4, offset = 0, fixed_abs, tag = 'sflag constant byte address 0x0 - dummy sync flag']
  #allocation12 [shape = 's32[]', space=sflag, size = 0x4, offset = 0, fixed_abs, tag = 'sflag constant byte address 0x0 - dummy sync flag']
  #allocation13 [shape = 's32[]', space=sflag, size = 0x4, offset = 0, fixed_abs, tag = 'sflag constant byte address 0x0 - dummy sync flag']
  #allocation14 [shape = 's32[]', space=sflag, size = 0x4, offset = 0, fixed_abs, tag = 'sflag constant byte address 0x0 - dummy sync flag']
  #allocation15 [shape = 's32[]', space=sflag, size = 0x4, offset = 0, fixed_abs, tag = 'sflag constant byte address 0x0 - dummy sync flag']
  #allocation16 [shape = 's32[]', space=sflag, size = 0x4, offset = 0, fixed_abs, tag = 'sflag constant byte address 0x0 - dummy sync flag']
  #allocation17 [shape = 's32[]', space=sflag, size = 0x4, offset = 0, fixed_abs, tag = 'sflag constant byte address 0x0 - dummy sync flag']
  #allocation18 [shape = 's32[]', space=sflag, size = 0x4, offset = 0, fixed_abs, tag = 'sflag constant byte address 0x0 - dummy sync flag']
  #allocation19 [shape = 's32[]', space=sflag, size = 0x4, offset = 0, fixed_abs, tag = 'sflag constant byte address 0x0 - dummy sync flag']
  #allocation20 [shape = 's32[]', space=sflag, size = 0x4, offset = 0, fixed_abs, tag = 'sflag constant byte address 0x0 - dummy sync flag']
  #allocation21 [shape = 's32[]', space=sflag, size = 0x4, offset = 0, fixed_abs, tag = 'sflag constant byte address 0x0 - dummy sync flag']
  #allocation22 [shape = 's32[]', space=sflag, size = 0x4, offset = 0, fixed_abs, tag = 'sflag constant byte address 0x0 - dummy sync flag']
  #allocation23 [shape = 's32[]', space=sflag, size = 0x4, offset = 0, fixed_abs, tag = 'sflag constant byte address 0x0 - dummy sync flag']
  %s0 = inlined_call_operand.vmem [shape: s32[16], index: 0, kind: input, shape index: {}]
  %s1 = inlined_call_operand.<no memory space> [shape: s32[1], index: 1, kind: input, shape index: {}]
  %s2 = inlined_call_operand.vmem [shape: f32[10,8], index: 2, kind: input, shape index: {}, may-alias: {2,4}]
  %s3 = inlined_call_operand.vmem [shape: f32[16,8], index: 3, kind: input, shape index: {}]
  %s4 = inlined_call_operand.vmem [shape: f32[10,8], index: 4, kind: output, shape index: {}, may-alias: {2,4}]
  %s5 = sld [smem:[#allocation0]]
  $region569: #{_index_put_jit.1} parent=0
    _
  %s7 = ssub.s32 1, %s5
  %s8 = scalar_select 0, %s7, %s5
  %s10 = sshll.u32 %s0, 4
  %s11 = int_to_ptr.vmem [resolvable:$true] %s10
  %13 = dma.vmem_to_smem %s11, 16, [#allocation6], [#allocation5]
  %14 = sst [smem:[#allocation7]] %s1
  %16 = dma.done [#allocation5], 16
  %17 = sfence
  loop: start=0, step=1, limit=3
  $region2: #{_index_put_jit.1} parent=0 // loop_pre_header
    _
  $region3: #{_index_put_jit.1} parent=0 // loop_header
    %s19 = sphi 0, %s23
    %p20 = scmp.ge.s32.totalorder %s19, 3
    %s28 = sphi 0, %s30
    %s31 = sphi 0, %s28
    %s41 = sphi 0, %s31
  $region4: #{_index_put_jit.1} parent=0 // loop_header_branch
    %22 = sbr.rel (%p20) target = $region8
  $region5: #{_index_put_jit.1} parent=0 // loop_body
    %s24 = ssub.s32 %s19, 1
    %s25 = sadd.s32 %s19, 1
    %s26 = ssub.s32 %s19, %s25
    %p27 = scmp.eq.s32.totalorder %s26, 0
    %s29 = sadd.s32 %s28, 1
    %s30 = scalar_select %p27, %s28, %s29
    %p32 = pneg %p27
    %p33 = scmp.eq.s32.totalorder %s19, 1
    %p34 = por %p32, %p33
    %p35 = scmp.ne.s32.totalorder %s28, %s31
    %p36 = scmp.eq.s32.totalorder %s19, 0
    %p37 = por %p35, %p36
    %p38 = scmp.ne.s32.totalorder %s28, %s31
    %p39 = scmp.eq.s32.totalorder %s24, 1
    %p40 = por %p38, %p39
    %p42 = scmp.ne.s32.totalorder %s31, %s41
    %p43 = scmp.eq.s32.totalorder %s24, 0
    %p44 = por %p42, %p43
    %p45 = scmp.le.s32.totalorder 1, %s19
    // Predicated region
    $region9: #{_index_put_jit.1} parent=5 // pred_check
      %p46 = pneg %p45
    $region10: #{_index_put_jit.1} parent=5 // pred_check_branch
      %48 = sbr.rel (%p46) target = $region12
    $region11: #{_index_put_jit.1} parent=5 // pred_region
      %s49 = ssub.s32 %s19, 1
    $region12: #{_index_put_jit.1} parent=5 // pred_fallthru
      _
    %p50 = scmp.lt.s32.totalorder %s19, 2
    // Predicated region
    $region13: #{_index_put_jit.1} parent=5 // pred_check
      %p51 = pneg %p50
    $region14: #{_index_put_jit.1} parent=5 // pred_check_branch
      %53 = sbr.rel (%p51) target = $region16
    $region15: #{_index_put_jit.1} parent=5 // pred_region
      // Predicated region
      $region17: #{_index_put_jit.1} parent=15 // pred_check
        %p54 = pneg %p37
      $region18: #{_index_put_jit.1} parent=15 // pred_check_branch
        %56 = sbr.rel (%p54) target = $region20
      $region19: #{_index_put_jit.1} parent=15 // pred_region
        %p57 = scmp.lt.s32.totalorder %s19, 1
        %s58 = scalar_select %p57, %s19, 1
        %s59 = smul.addr %s58, 8
        %s60 = scalar_lea.vmem %s3, %s59
      $region20: #{_index_put_jit.1} parent=15 // pred_fallthru
        _
    $region16: #{_index_put_jit.1} parent=5 // pred_fallthru
      _
    %p61 = scmp.le.s32.totalorder 1, %s19
    // Predicated region
    $region21: #{_index_put_jit.1} parent=5 // pred_check
      %p62 = pneg %p61
    $region22: #{_index_put_jit.1} parent=5 // pred_check_branch
      %64 = sbr.rel (%p62) target = $region24
    $region23: #{_index_put_jit.1} parent=5 // pred_region
      %s65 = ssub.s32 %s19, 1
      %p66 = scmp.lt.s32.totalorder %s24, 1
      %s67 = scalar_select %p66, %s24, 1
      %s68 = smul.addr %s67, 8
      %s69 = scalar_lea.vmem %s3, %s68
      %p70 = pneg %p44
      %p71 = pneg %p40
      %p72 = scmp.lt.s32.totalorder %s24, 1
      %s73 = scalar_select %p72, %s24, 1
      %s74 = smul.addr %s73, 8
      %s75 = scalar_lea.vmem %s3, %s74
      %s76 = smul.u32 %s24, 8
      %s77 = sld [smem:[#allocation7]]
      %s78 = sld [smem:[#allocation6 + %s76]]
      %s79 = sadd.s32 %s76, 1
      %s80 = sld [smem:[#allocation6 + %s79]]
      %s81 = sadd.s32 %s76, 2
      %s82 = sld [smem:[#allocation6 + %s81]]
      %s83 = sadd.s32 %s76, 3
      %s84 = sld [smem:[#allocation6 + %s83]]
      %s85 = sadd.s32 %s76, 4
      %s86 = sld [smem:[#allocation6 + %s85]]
      %s87 = sadd.s32 %s76, 5
      %s88 = sld [smem:[#allocation6 + %s87]]
      %s89 = sadd.s32 %s76, 6
      %s90 = sld [smem:[#allocation6 + %s89]]
      %s91 = sadd.s32 %s76, 7
      %s92 = sld [smem:[#allocation6 + %s91]]
      %s93 = scalar_lea.vmem %s4, %s78
      // Predicated region
      $region25: #{_index_put_jit.1} parent=23 // pred_check
        _
      $region26: #{_index_put_jit.1} parent=23 // pred_check_branch
        %95 = sbr.rel target = $region28
      $region27: #{_index_put_jit.1} parent=23 // pred_region
        // Predicated region
        $region40: #{_index_put_jit.1} parent=27 // pred_check
          _
        $region41: #{_index_put_jit.1} parent=27 // pred_check_branch
          %111 = sbr.rel (0) target = $region43
        $region42: #{_index_put_jit.1} parent=27 // pred_region
          %s113 = ssub.s32 2, 1
          loop: start=0, step=1, limit=1
          $region44: #{_index_put_jit.1} parent=42 // loop_pre_header
            _
          $region45: #{_index_put_jit.1} parent=42 // loop_header
            %s115 = sphi 0, %s119
            %p116 = scmp.ge.s32.totalorder %s115, 1
            %s120 = sphi %s93, %s93
            %s121 = sphi [#allocation2], [#allocation2]
          $region46: #{_index_put_jit.1} parent=42 // loop_header_branch
            %118 = sbr.rel (%p116) target = $region50
          $region47: #{_index_put_jit.1} parent=42 // loop_body
            %v122 = vld [vmem:[%s120] sm:%s113]
            %123 = vst [vmem:[%s121] sm:%s113] %v122
          $region48: #{_index_put_jit.1} parent=42 // loop_footer
            %s119 = sadd.s32 1, %s115
          $region49: #{_index_put_jit.1} parent=42 // loop_footer_branch
            %114 = sbr.rel target = $region45
          $region50: #{_index_put_jit.1} parent=42 // loop_exit
            _
        $region43: #{_index_put_jit.1} parent=27 // pred_fallthru
          _
      $region28: #{_index_put_jit.1} parent=23 // pred_fallthru
        _
      // Predicated region
      $region29: #{_index_put_jit.1} parent=23 // pred_check
        _
      $region30: #{_index_put_jit.1} parent=23 // pred_check_branch
        %97 = sbr.rel (0) target = $region32
      $region31: #{_index_put_jit.1} parent=23 // pred_region
        %s99 = ssub.s32 2, 1
        loop: start=0, step=1, limit=1
        $region33: #{_index_put_jit.1} parent=31 // loop_pre_header
          _
        $region34: #{_index_put_jit.1} parent=31 // loop_header
          %s101 = sphi 0, %s105
          %p102 = scmp.ge.s32.totalorder %s101, 1
          %s106 = sphi %s93, %s93
          %s107 = sphi [#allocation2], [#allocation2]
        $region35: #{_index_put_jit.1} parent=31 // loop_header_branch
          %104 = sbr.rel (%p102) target = $region39
        $region36: #{_index_put_jit.1} parent=31 // loop_body
          %v108 = vld [vmem:[%s106] sm:%s99]
          %109 = vst [vmem:[%s107] sm:%s99] %v108
        $region37: #{_index_put_jit.1} parent=31 // loop_footer
          %s105 = sadd.s32 1, %s101
        $region38: #{_index_put_jit.1} parent=31 // loop_footer_branch
          %100 = sbr.rel target = $region34
        $region39: #{_index_put_jit.1} parent=31 // loop_exit
          _
      $region32: #{_index_put_jit.1} parent=23 // pred_fallthru
        _
      // Predicated region
      $region51: #{_index_put_jit.1} parent=23 // pred_check
        _
      $region52: #{_index_put_jit.1} parent=23 // pred_check_branch
        %126 = sbr.rel (0) target = $region54
      $region53: #{_index_put_jit.1} parent=23 // pred_region
        %127 = vsyncadd [#allocation3], 16
      $region54: #{_index_put_jit.1} parent=23 // pred_fallthru
        _
      %s128 = scalar_lea.vmem %s4, %s80
      %s129 = scalar_lea.vmem [#allocation2], 1
      %s130 = scalar_lea.sflag [#allocation3], 1
      // Predicated region
      $region55: #{_index_put_jit.1} parent=23 // pred_check
        _
      $region56: #{_index_put_jit.1} parent=23 // pred_check_branch
        %132 = sbr.rel target = $region58
      $region57: #{_index_put_jit.1} parent=23 // pred_region
        // Predicated region
        $region70: #{_index_put_jit.1} parent=57 // pred_check
          _
        $region71: #{_index_put_jit.1} parent=57 // pred_check_branch
          %148 = sbr.rel (0) target = $region73
        $region72: #{_index_put_jit.1} parent=57 // pred_region
          %s150 = ssub.s32 2, 1
          loop: start=0, step=1, limit=1
          $region74: #{_index_put_jit.1} parent=72 // loop_pre_header
            _
          $region75: #{_index_put_jit.1} parent=72 // loop_header
            %s152 = sphi 0, %s156
            %p153 = scmp.ge.s32.totalorder %s152, 1
            %s157 = sphi %s128, %s128
            %s158 = sphi %s129, %s129
          $region76: #{_index_put_jit.1} parent=72 // loop_header_branch
            %155 = sbr.rel (%p153) target = $region80
          $region77: #{_index_put_jit.1} parent=72 // loop_body
            %v159 = vld [vmem:[%s157] sm:%s150]
            %160 = vst [vmem:[%s158] sm:%s150] %v159
          $region78: #{_index_put_jit.1} parent=72 // loop_footer
            %s156 = sadd.s32 1, %s152
          $region79: #{_index_put_jit.1} parent=72 // loop_footer_branch
            %151 = sbr.rel target = $region75
          $region80: #{_index_put_jit.1} parent=72 // loop_exit
            _
        $region73: #{_index_put_jit.1} parent=57 // pred_fallthru
          _
      $region58: #{_index_put_jit.1} parent=23 // pred_fallthru
        _
      // Predicated region
      $region59: #{_index_put_jit.1} parent=23 // pred_check
        _
      $region60: #{_index_put_jit.1} parent=23 // pred_check_branch
        %134 = sbr.rel (0) target = $region62
      $region61: #{_index_put_jit.1} parent=23 // pred_region
        %s136 = ssub.s32 2, 1
        loop: start=0, step=1, limit=1
        $region63: #{_index_put_jit.1} parent=61 // loop_pre_header
          _
        $region64: #{_index_put_jit.1} parent=61 // loop_header
          %s138 = sphi 0, %s142
          %p139 = scmp.ge.s32.totalorder %s138, 1
          %s143 = sphi %s128, %s128
          %s144 = sphi %s129, %s129
        $region65: #{_index_put_jit.1} parent=61 // loop_header_branch
          %141 = sbr.rel (%p139) target = $region69
        $region66: #{_index_put_jit.1} parent=61 // loop_body
          %v145 = vld [vmem:[%s143] sm:%s136]
          %146 = vst [vmem:[%s144] sm:%s136] %v145
        $region67: #{_index_put_jit.1} parent=61 // loop_footer
          %s142 = sadd.s32 1, %s138
        $region68: #{_index_put_jit.1} parent=61 // loop_footer_branch
          %137 = sbr.rel target = $region64
        $region69: #{_index_put_jit.1} parent=61 // loop_exit
          _
      $region62: #{_index_put_jit.1} parent=23 // pred_fallthru
        _
      // Predicated region
      $region81: #{_index_put_jit.1} parent=23 // pred_check
        _
      $region82: #{_index_put_jit.1} parent=23 // pred_check_branch
        %163 = sbr.rel (0) target = $region84
      $region83: #{_index_put_jit.1} parent=23 // pred_region
        %164 = vsyncadd %s130, 16
      $region84: #{_index_put_jit.1} parent=23 // pred_fallthru
        _
      %s165 = scalar_lea.vmem %s4, %s82
      %s166 = scalar_lea.vmem [#allocation2], 2
      %s167 = scalar_lea.sflag [#allocation3], 2
      // Predicated region
      $region85: #{_index_put_jit.1} parent=23 // pred_check
        _
      $region86: #{_index_put_jit.1} parent=23 // pred_check_branch
        %169 = sbr.rel target = $region88
      $region87: #{_index_put_jit.1} parent=23 // pred_region
        // Predicated region
        $region100: #{_index_put_jit.1} parent=87 // pred_check
          _
        $region101: #{_index_put_jit.1} parent=87 // pred_check_branch
          %185 = sbr.rel (0) target = $region103
        $region102: #{_index_put_jit.1} parent=87 // pred_region
          %s187 = ssub.s32 2, 1
          loop: start=0, step=1, limit=1
          $region104: #{_index_put_jit.1} parent=102 // loop_pre_header
            _
          $region105: #{_index_put_jit.1} parent=102 // loop_header
            %s189 = sphi 0, %s193
            %p190 = scmp.ge.s32.totalorder %s189, 1
            %s194 = sphi %s165, %s165
            %s195 = sphi %s166, %s166
          $region106: #{_index_put_jit.1} parent=102 // loop_header_branch
            %192 = sbr.rel (%p190) target = $region110
          $region107: #{_index_put_jit.1} parent=102 // loop_body
            %v196 = vld [vmem:[%s194] sm:%s187]
            %197 = vst [vmem:[%s195] sm:%s187] %v196
          $region108: #{_index_put_jit.1} parent=102 // loop_footer
            %s193 = sadd.s32 1, %s189
          $region109: #{_index_put_jit.1} parent=102 // loop_footer_branch
            %188 = sbr.rel target = $region105
          $region110: #{_index_put_jit.1} parent=102 // loop_exit
            _
        $region103: #{_index_put_jit.1} parent=87 // pred_fallthru
          _
      $region88: #{_index_put_jit.1} parent=23 // pred_fallthru
        _
      // Predicated region
      $region89: #{_index_put_jit.1} parent=23 // pred_check
        _
      $region90: #{_index_put_jit.1} parent=23 // pred_check_branch
        %171 = sbr.rel (0) target = $region92
      $region91: #{_index_put_jit.1} parent=23 // pred_region
        %s173 = ssub.s32 2, 1
        loop: start=0, step=1, limit=1
        $region93: #{_index_put_jit.1} parent=91 // loop_pre_header
          _
        $region94: #{_index_put_jit.1} parent=91 // loop_header
          %s175 = sphi 0, %s179
          %p176 = scmp.ge.s32.totalorder %s175, 1
          %s180 = sphi %s165, %s165
          %s181 = sphi %s166, %s166
        $region95: #{_index_put_jit.1} parent=91 // loop_header_branch
          %178 = sbr.rel (%p176) target = $region99
        $region96: #{_index_put_jit.1} parent=91 // loop_body
          %v182 = vld [vmem:[%s180] sm:%s173]
          %183 = vst [vmem:[%s181] sm:%s173] %v182
        $region97: #{_index_put_jit.1} parent=91 // loop_footer
          %s179 = sadd.s32 1, %s175
        $region98: #{_index_put_jit.1} parent=91 // loop_footer_branch
          %174 = sbr.rel target = $region94
        $region99: #{_index_put_jit.1} parent=91 // loop_exit
          _
      $region92: #{_index_put_jit.1} parent=23 // pred_fallthru
        _
      // Predicated region
      $region111: #{_index_put_jit.1} parent=23 // pred_check
        _
      $region112: #{_index_put_jit.1} parent=23 // pred_check_branch
        %200 = sbr.rel (0) target = $region114
      $region113: #{_index_put_jit.1} parent=23 // pred_region
        %201 = vsyncadd %s167, 16
      $region114: #{_index_put_jit.1} parent=23 // pred_fallthru
        _
      %s202 = scalar_lea.vmem %s4, %s84
      %s203 = scalar_lea.vmem [#allocation2], 3
      %s204 = scalar_lea.sflag [#allocation3], 3
      // Predicated region
      $region115: #{_index_put_jit.1} parent=23 // pred_check
        _
      $region116: #{_index_put_jit.1} parent=23 // pred_check_branch
        %206 = sbr.rel target = $region118
      $region117: #{_index_put_jit.1} parent=23 // pred_region
        // Predicated region
        $region130: #{_index_put_jit.1} parent=117 // pred_check
          _
        $region131: #{_index_put_jit.1} parent=117 // pred_check_branch
          %222 = sbr.rel (0) target = $region133
        $region132: #{_index_put_jit.1} parent=117 // pred_region
          %s224 = ssub.s32 2, 1
          loop: start=0, step=1, limit=1
          $region134: #{_index_put_jit.1} parent=132 // loop_pre_header
            _
          $region135: #{_index_put_jit.1} parent=132 // loop_header
            %s226 = sphi 0, %s230
            %p227 = scmp.ge.s32.totalorder %s226, 1
            %s231 = sphi %s202, %s202
            %s232 = sphi %s203, %s203
          $region136: #{_index_put_jit.1} parent=132 // loop_header_branch
            %229 = sbr.rel (%p227) target = $region140
          $region137: #{_index_put_jit.1} parent=132 // loop_body
            %v233 = vld [vmem:[%s231] sm:%s224]
            %234 = vst [vmem:[%s232] sm:%s224] %v233
          $region138: #{_index_put_jit.1} parent=132 // loop_footer
            %s230 = sadd.s32 1, %s226
          $region139: #{_index_put_jit.1} parent=132 // loop_footer_branch
            %225 = sbr.rel target = $region135
          $region140: #{_index_put_jit.1} parent=132 // loop_exit
            _
        $region133: #{_index_put_jit.1} parent=117 // pred_fallthru
          _
      $region118: #{_index_put_jit.1} parent=23 // pred_fallthru
        _
      // Predicated region
      $region119: #{_index_put_jit.1} parent=23 // pred_check
        _
      $region120: #{_index_put_jit.1} parent=23 // pred_check_branch
        %208 = sbr.rel (0) target = $region122
      $region121: #{_index_put_jit.1} parent=23 // pred_region
        %s210 = ssub.s32 2, 1
        loop: start=0, step=1, limit=1
        $region123: #{_index_put_jit.1} parent=121 // loop_pre_header
          _
        $region124: #{_index_put_jit.1} parent=121 // loop_header
          %s212 = sphi 0, %s216
          %p213 = scmp.ge.s32.totalorder %s212, 1
          %s217 = sphi %s202, %s202
          %s218 = sphi %s203, %s203
        $region125: #{_index_put_jit.1} parent=121 // loop_header_branch
          %215 = sbr.rel (%p213) target = $region129
        $region126: #{_index_put_jit.1} parent=121 // loop_body
          %v219 = vld [vmem:[%s217] sm:%s210]
          %220 = vst [vmem:[%s218] sm:%s210] %v219
        $region127: #{_index_put_jit.1} parent=121 // loop_footer
          %s216 = sadd.s32 1, %s212
        $region128: #{_index_put_jit.1} parent=121 // loop_footer_branch
          %211 = sbr.rel target = $region124
        $region129: #{_index_put_jit.1} parent=121 // loop_exit
          _
      $region122: #{_index_put_jit.1} parent=23 // pred_fallthru
        _
      // Predicated region
      $region141: #{_index_put_jit.1} parent=23 // pred_check
        _
      $region142: #{_index_put_jit.1} parent=23 // pred_check_branch
        %237 = sbr.rel (0) target = $region144
      $region143: #{_index_put_jit.1} parent=23 // pred_region
        %238 = vsyncadd %s204, 16
      $region144: #{_index_put_jit.1} parent=23 // pred_fallthru
        _
      %s239 = scalar_lea.vmem %s4, %s86
      %s240 = scalar_lea.vmem [#allocation2], 4
      %s241 = scalar_lea.sflag [#allocation3], 4
      // Predicated region
      $region145: #{_index_put_jit.1} parent=23 // pred_check
        _
      $region146: #{_index_put_jit.1} parent=23 // pred_check_branch
        %243 = sbr.rel target = $region148
      $region147: #{_index_put_jit.1} parent=23 // pred_region
        // Predicated region
        $region160: #{_index_put_jit.1} parent=147 // pred_check
          _
        $region161: #{_index_put_jit.1} parent=147 // pred_check_branch
          %259 = sbr.rel (0) target = $region163
        $region162: #{_index_put_jit.1} parent=147 // pred_region
          %s261 = ssub.s32 2, 1
          loop: start=0, step=1, limit=1
          $region164: #{_index_put_jit.1} parent=162 // loop_pre_header
            _
          $region165: #{_index_put_jit.1} parent=162 // loop_header
            %s263 = sphi 0, %s267
            %p264 = scmp.ge.s32.totalorder %s263, 1
            %s268 = sphi %s239, %s239
            %s269 = sphi %s240, %s240
          $region166: #{_index_put_jit.1} parent=162 // loop_header_branch
            %266 = sbr.rel (%p264) target = $region170
          $region167: #{_index_put_jit.1} parent=162 // loop_body
            %v270 = vld [vmem:[%s268] sm:%s261]
            %271 = vst [vmem:[%s269] sm:%s261] %v270
          $region168: #{_index_put_jit.1} parent=162 // loop_footer
            %s267 = sadd.s32 1, %s263
          $region169: #{_index_put_jit.1} parent=162 // loop_footer_branch
            %262 = sbr.rel target = $region165
          $region170: #{_index_put_jit.1} parent=162 // loop_exit
            _
        $region163: #{_index_put_jit.1} parent=147 // pred_fallthru
          _
      $region148: #{_index_put_jit.1} parent=23 // pred_fallthru
        _
      // Predicated region
      $region149: #{_index_put_jit.1} parent=23 // pred_check
        _
      $region150: #{_index_put_jit.1} parent=23 // pred_check_branch
        %245 = sbr.rel (0) target = $region152
      $region151: #{_index_put_jit.1} parent=23 // pred_region
        %s247 = ssub.s32 2, 1
        loop: start=0, step=1, limit=1
        $region153: #{_index_put_jit.1} parent=151 // loop_pre_header
          _
        $region154: #{_index_put_jit.1} parent=151 // loop_header
          %s249 = sphi 0, %s253
          %p250 = scmp.ge.s32.totalorder %s249, 1
          %s254 = sphi %s239, %s239
          %s255 = sphi %s240, %s240
        $region155: #{_index_put_jit.1} parent=151 // loop_header_branch
          %252 = sbr.rel (%p250) target = $region159
        $region156: #{_index_put_jit.1} parent=151 // loop_body
          %v256 = vld [vmem:[%s254] sm:%s247]
          %257 = vst [vmem:[%s255] sm:%s247] %v256
        $region157: #{_index_put_jit.1} parent=151 // loop_footer
          %s253 = sadd.s32 1, %s249
        $region158: #{_index_put_jit.1} parent=151 // loop_footer_branch
          %248 = sbr.rel target = $region154
        $region159: #{_index_put_jit.1} parent=151 // loop_exit
          _
      $region152: #{_index_put_jit.1} parent=23 // pred_fallthru
        _
      // Predicated region
      $region171: #{_index_put_jit.1} parent=23 // pred_check
        _
      $region172: #{_index_put_jit.1} parent=23 // pred_check_branch
        %274 = sbr.rel (0) target = $region174
      $region173: #{_index_put_jit.1} parent=23 // pred_region
        %275 = vsyncadd %s241, 16
      $region174: #{_index_put_jit.1} parent=23 // pred_fallthru
        _
      %s276 = scalar_lea.vmem %s4, %s88
      %s277 = scalar_lea.vmem [#allocation2], 5
      %s278 = scalar_lea.sflag [#allocation3], 5
      // Predicated region
      $region175: #{_index_put_jit.1} parent=23 // pred_check
        _
      $region176: #{_index_put_jit.1} parent=23 // pred_check_branch
        %280 = sbr.rel target = $region178
      $region177: #{_index_put_jit.1} parent=23 // pred_region
        // Predicated region
        $region190: #{_index_put_jit.1} parent=177 // pred_check
          _
        $region191: #{_index_put_jit.1} parent=177 // pred_check_branch
          %296 = sbr.rel (0) target = $region193
        $region192: #{_index_put_jit.1} parent=177 // pred_region
          %s298 = ssub.s32 2, 1
          loop: start=0, step=1, limit=1
          $region194: #{_index_put_jit.1} parent=192 // loop_pre_header
            _
          $region195: #{_index_put_jit.1} parent=192 // loop_header
            %s300 = sphi 0, %s304
            %p301 = scmp.ge.s32.totalorder %s300, 1
            %s305 = sphi %s276, %s276
            %s306 = sphi %s277, %s277
          $region196: #{_index_put_jit.1} parent=192 // loop_header_branch
            %303 = sbr.rel (%p301) target = $region200
          $region197: #{_index_put_jit.1} parent=192 // loop_body
            %v307 = vld [vmem:[%s305] sm:%s298]
            %308 = vst [vmem:[%s306] sm:%s298] %v307
          $region198: #{_index_put_jit.1} parent=192 // loop_footer
            %s304 = sadd.s32 1, %s300
          $region199: #{_index_put_jit.1} parent=192 // loop_footer_branch
            %299 = sbr.rel target = $region195
          $region200: #{_index_put_jit.1} parent=192 // loop_exit
            _
        $region193: #{_index_put_jit.1} parent=177 // pred_fallthru
          _
      $region178: #{_index_put_jit.1} parent=23 // pred_fallthru
        _
      // Predicated region
      $region179: #{_index_put_jit.1} parent=23 // pred_check
        _
      $region180: #{_index_put_jit.1} parent=23 // pred_check_branch
        %282 = sbr.rel (0) target = $region182
      $region181: #{_index_put_jit.1} parent=23 // pred_region
        %s284 = ssub.s32 2, 1
        loop: start=0, step=1, limit=1
        $region183: #{_index_put_jit.1} parent=181 // loop_pre_header
          _
        $region184: #{_index_put_jit.1} parent=181 // loop_header
          %s286 = sphi 0, %s290
          %p287 = scmp.ge.s32.totalorder %s286, 1
          %s291 = sphi %s276, %s276
          %s292 = sphi %s277, %s277
        $region185: #{_index_put_jit.1} parent=181 // loop_header_branch
          %289 = sbr.rel (%p287) target = $region189
        $region186: #{_index_put_jit.1} parent=181 // loop_body
          %v293 = vld [vmem:[%s291] sm:%s284]
          %294 = vst [vmem:[%s292] sm:%s284] %v293
        $region187: #{_index_put_jit.1} parent=181 // loop_footer
          %s290 = sadd.s32 1, %s286
        $region188: #{_index_put_jit.1} parent=181 // loop_footer_branch
          %285 = sbr.rel target = $region184
        $region189: #{_index_put_jit.1} parent=181 // loop_exit
          _
      $region182: #{_index_put_jit.1} parent=23 // pred_fallthru
        _
      // Predicated region
      $region201: #{_index_put_jit.1} parent=23 // pred_check
        _
      $region202: #{_index_put_jit.1} parent=23 // pred_check_branch
        %311 = sbr.rel (0) target = $region204
      $region203: #{_index_put_jit.1} parent=23 // pred_region
        %312 = vsyncadd %s278, 16
      $region204: #{_index_put_jit.1} parent=23 // pred_fallthru
        _
      %s313 = scalar_lea.vmem %s4, %s90
      %s314 = scalar_lea.vmem [#allocation2], 6
      %s315 = scalar_lea.sflag [#allocation3], 6
      // Predicated region
      $region205: #{_index_put_jit.1} parent=23 // pred_check
        _
      $region206: #{_index_put_jit.1} parent=23 // pred_check_branch
        %317 = sbr.rel target = $region208
      $region207: #{_index_put_jit.1} parent=23 // pred_region
        // Predicated region
        $region220: #{_index_put_jit.1} parent=207 // pred_check
          _
        $region221: #{_index_put_jit.1} parent=207 // pred_check_branch
          %333 = sbr.rel (0) target = $region223
        $region222: #{_index_put_jit.1} parent=207 // pred_region
          %s335 = ssub.s32 2, 1
          loop: start=0, step=1, limit=1
          $region224: #{_index_put_jit.1} parent=222 // loop_pre_header
            _
          $region225: #{_index_put_jit.1} parent=222 // loop_header
            %s337 = sphi 0, %s341
            %p338 = scmp.ge.s32.totalorder %s337, 1
            %s342 = sphi %s313, %s313
            %s343 = sphi %s314, %s314
          $region226: #{_index_put_jit.1} parent=222 // loop_header_branch
            %340 = sbr.rel (%p338) target = $region230
          $region227: #{_index_put_jit.1} parent=222 // loop_body
            %v344 = vld [vmem:[%s342] sm:%s335]
            %345 = vst [vmem:[%s343] sm:%s335] %v344
          $region228: #{_index_put_jit.1} parent=222 // loop_footer
            %s341 = sadd.s32 1, %s337
          $region229: #{_index_put_jit.1} parent=222 // loop_footer_branch
            %336 = sbr.rel target = $region225
          $region230: #{_index_put_jit.1} parent=222 // loop_exit
            _
        $region223: #{_index_put_jit.1} parent=207 // pred_fallthru
          _
      $region208: #{_index_put_jit.1} parent=23 // pred_fallthru
        _
      // Predicated region
      $region209: #{_index_put_jit.1} parent=23 // pred_check
        _
      $region210: #{_index_put_jit.1} parent=23 // pred_check_branch
        %319 = sbr.rel (0) target = $region212
      $region211: #{_index_put_jit.1} parent=23 // pred_region
        %s321 = ssub.s32 2, 1
        loop: start=0, step=1, limit=1
        $region213: #{_index_put_jit.1} parent=211 // loop_pre_header
          _
        $region214: #{_index_put_jit.1} parent=211 // loop_header
          %s323 = sphi 0, %s327
          %p324 = scmp.ge.s32.totalorder %s323, 1
          %s328 = sphi %s313, %s313
          %s329 = sphi %s314, %s314
        $region215: #{_index_put_jit.1} parent=211 // loop_header_branch
          %326 = sbr.rel (%p324) target = $region219
        $region216: #{_index_put_jit.1} parent=211 // loop_body
          %v330 = vld [vmem:[%s328] sm:%s321]
          %331 = vst [vmem:[%s329] sm:%s321] %v330
        $region217: #{_index_put_jit.1} parent=211 // loop_footer
          %s327 = sadd.s32 1, %s323
        $region218: #{_index_put_jit.1} parent=211 // loop_footer_branch
          %322 = sbr.rel target = $region214
        $region219: #{_index_put_jit.1} parent=211 // loop_exit
          _
      $region212: #{_index_put_jit.1} parent=23 // pred_fallthru
        _
      // Predicated region
      $region231: #{_index_put_jit.1} parent=23 // pred_check
        _
      $region232: #{_index_put_jit.1} parent=23 // pred_check_branch
        %348 = sbr.rel (0) target = $region234
      $region233: #{_index_put_jit.1} parent=23 // pred_region
        %349 = vsyncadd %s315, 16
      $region234: #{_index_put_jit.1} parent=23 // pred_fallthru
        _
      %s350 = scalar_lea.vmem %s4, %s92
      %s351 = scalar_lea.vmem [#allocation2], 7
      %s352 = scalar_lea.sflag [#allocation3], 7
      // Predicated region
      $region235: #{_index_put_jit.1} parent=23 // pred_check
        _
      $region236: #{_index_put_jit.1} parent=23 // pred_check_branch
        %354 = sbr.rel target = $region238
      $region237: #{_index_put_jit.1} parent=23 // pred_region
        // Predicated region
        $region250: #{_index_put_jit.1} parent=237 // pred_check
          _
        $region251: #{_index_put_jit.1} parent=237 // pred_check_branch
          %370 = sbr.rel (0) target = $region253
        $region252: #{_index_put_jit.1} parent=237 // pred_region
          %s372 = ssub.s32 2, 1
          loop: start=0, step=1, limit=1
          $region254: #{_index_put_jit.1} parent=252 // loop_pre_header
            _
          $region255: #{_index_put_jit.1} parent=252 // loop_header
            %s374 = sphi 0, %s378
            %p375 = scmp.ge.s32.totalorder %s374, 1
            %s379 = sphi %s350, %s350
            %s380 = sphi %s351, %s351
          $region256: #{_index_put_jit.1} parent=252 // loop_header_branch
            %377 = sbr.rel (%p375) target = $region260
          $region257: #{_index_put_jit.1} parent=252 // loop_body
            %v381 = vld [vmem:[%s379] sm:%s372]
            %382 = vst [vmem:[%s380] sm:%s372] %v381
          $region258: #{_index_put_jit.1} parent=252 // loop_footer
            %s378 = sadd.s32 1, %s374
          $region259: #{_index_put_jit.1} parent=252 // loop_footer_branch
            %373 = sbr.rel target = $region255
          $region260: #{_index_put_jit.1} parent=252 // loop_exit
            _
        $region253: #{_index_put_jit.1} parent=237 // pred_fallthru
          _
      $region238: #{_index_put_jit.1} parent=23 // pred_fallthru
        _
      // Predicated region
      $region239: #{_index_put_jit.1} parent=23 // pred_check
        _
      $region240: #{_index_put_jit.1} parent=23 // pred_check_branch
        %356 = sbr.rel (0) target = $region242
      $region241: #{_index_put_jit.1} parent=23 // pred_region
        %s358 = ssub.s32 2, 1
        loop: start=0, step=1, limit=1
        $region243: #{_index_put_jit.1} parent=241 // loop_pre_header
          _
        $region244: #{_index_put_jit.1} parent=241 // loop_header
          %s360 = sphi 0, %s364
          %p361 = scmp.ge.s32.totalorder %s360, 1
          %s365 = sphi %s350, %s350
          %s366 = sphi %s351, %s351
        $region245: #{_index_put_jit.1} parent=241 // loop_header_branch
          %363 = sbr.rel (%p361) target = $region249
        $region246: #{_index_put_jit.1} parent=241 // loop_body
          %v367 = vld [vmem:[%s365] sm:%s358]
          %368 = vst [vmem:[%s366] sm:%s358] %v367
        $region247: #{_index_put_jit.1} parent=241 // loop_footer
          %s364 = sadd.s32 1, %s360
        $region248: #{_index_put_jit.1} parent=241 // loop_footer_branch
          %359 = sbr.rel target = $region244
        $region249: #{_index_put_jit.1} parent=241 // loop_exit
          _
      $region242: #{_index_put_jit.1} parent=23 // pred_fallthru
        _
      // Predicated region
      $region261: #{_index_put_jit.1} parent=23 // pred_check
        _
      $region262: #{_index_put_jit.1} parent=23 // pred_check_branch
        %385 = sbr.rel (0) target = $region264
      $region263: #{_index_put_jit.1} parent=23 // pred_region
        %386 = vsyncadd %s352, 16
      $region264: #{_index_put_jit.1} parent=23 // pred_fallthru
        _
      %s387 = smul.u32 1, 1
      %s388 = sshll.u32 %s387, 4
      %389 = dma.done [#allocation3], %s388
      %s390 = sshll.u32 %s387, 4
      %391 = dma.done %s130, %s390
      %s392 = sshll.u32 %s387, 4
      %393 = dma.done %s167, %s392
      %s394 = sshll.u32 %s387, 4
      %395 = dma.done %s204, %s394
      %s396 = sshll.u32 %s387, 4
      %397 = dma.done %s241, %s396
      %s398 = sshll.u32 %s387, 4
      %399 = dma.done %s278, %s398
      %s400 = sshll.u32 %s387, 4
      %401 = dma.done %s315, %s400
      %s402 = sshll.u32 %s387, 4
      %403 = dma.done %s352, %s402
      %v404 = vld [vmem:[#allocation2] sm:$0xff]
      %v405 = vld [vmem:[%s75] sm:$0xff]
      %v406 = vadd.f32 %v404, %v405
      %vm407 = vcmask 64512
      %408 = vst.msk [vmem:[#allocation2] sm:$0xff] %vm407, %v406
      %p409 = scmp.lt.s32.totalorder %s76, %s77
      // Predicated region
      $region265: #{_index_put_jit.1} parent=23 // pred_check
        %p410 = pneg %p409
      $region266: #{_index_put_jit.1} parent=23 // pred_check_branch
        %412 = sbr.rel (%p410) target = $region268
      $region267: #{_index_put_jit.1} parent=23 // pred_region
        // Predicated region
        $region269: #{_index_put_jit.1} parent=267 // pred_check
          _
        $region270: #{_index_put_jit.1} parent=267 // pred_check_branch
          %414 = sbr.rel target = $region272
        $region271: #{_index_put_jit.1} parent=267 // pred_region
          // Predicated region
          $region284: #{_index_put_jit.1} parent=271 // pred_check
            _
          $region285: #{_index_put_jit.1} parent=271 // pred_check_branch
            %430 = sbr.rel (0) target = $region287
          $region286: #{_index_put_jit.1} parent=271 // pred_region
            %s432 = ssub.s32 2, 1
            loop: start=0, step=1, limit=1
            $region288: #{_index_put_jit.1} parent=286 // loop_pre_header
              _
            $region289: #{_index_put_jit.1} parent=286 // loop_header
              %s434 = sphi 0, %s438
              %p435 = scmp.ge.s32.totalorder %s434, 1
              %s439 = sphi [#allocation2], [#allocation2]
              %s440 = sphi %s93, %s93
            $region290: #{_index_put_jit.1} parent=286 // loop_header_branch
              %437 = sbr.rel (%p435) target = $region294
            $region291: #{_index_put_jit.1} parent=286 // loop_body
              %v441 = vld [vmem:[%s439] sm:%s432]
              %442 = vst [vmem:[%s440] sm:%s432] %v441
            $region292: #{_index_put_jit.1} parent=286 // loop_footer
              %s438 = sadd.s32 1, %s434
            $region293: #{_index_put_jit.1} parent=286 // loop_footer_branch
              %433 = sbr.rel target = $region289
            $region294: #{_index_put_jit.1} parent=286 // loop_exit
              _
          $region287: #{_index_put_jit.1} parent=271 // pred_fallthru
            _
        $region272: #{_index_put_jit.1} parent=267 // pred_fallthru
          _
        // Predicated region
        $region273: #{_index_put_jit.1} parent=267 // pred_check
          _
        $region274: #{_index_put_jit.1} parent=267 // pred_check_branch
          %416 = sbr.rel (0) target = $region276
        $region275: #{_index_put_jit.1} parent=267 // pred_region
          %s418 = ssub.s32 2, 1
          loop: start=0, step=1, limit=1
          $region277: #{_index_put_jit.1} parent=275 // loop_pre_header
            _
          $region278: #{_index_put_jit.1} parent=275 // loop_header
            %s420 = sphi 0, %s424
            %p421 = scmp.ge.s32.totalorder %s420, 1
            %s425 = sphi [#allocation2], [#allocation2]
            %s426 = sphi %s93, %s93
          $region279: #{_index_put_jit.1} parent=275 // loop_header_branch
            %423 = sbr.rel (%p421) target = $region283
          $region280: #{_index_put_jit.1} parent=275 // loop_body
            %v427 = vld [vmem:[%s425] sm:%s418]
            %428 = vst [vmem:[%s426] sm:%s418] %v427
          $region281: #{_index_put_jit.1} parent=275 // loop_footer
            %s424 = sadd.s32 1, %s420
          $region282: #{_index_put_jit.1} parent=275 // loop_footer_branch
            %419 = sbr.rel target = $region278
          $region283: #{_index_put_jit.1} parent=275 // loop_exit
            _
        $region276: #{_index_put_jit.1} parent=267 // pred_fallthru
          _
        // Predicated region
        $region295: #{_index_put_jit.1} parent=267 // pred_check
          _
        $region296: #{_index_put_jit.1} parent=267 // pred_check_branch
          %445 = sbr.rel (0) target = $region298
        $region297: #{_index_put_jit.1} parent=267 // pred_region
          %446 = vsyncadd [#allocation4], 16
        $region298: #{_index_put_jit.1} parent=267 // pred_fallthru
          _
      $region268: #{_index_put_jit.1} parent=23 // pred_fallthru
        _
      %p447 = scmp.lt.s32.totalorder %s79, %s77
      // Predicated region
      $region299: #{_index_put_jit.1} parent=23 // pred_check
        %p448 = pneg %p447
      $region300: #{_index_put_jit.1} parent=23 // pred_check_branch
        %450 = sbr.rel (%p448) target = $region302
      $region301: #{_index_put_jit.1} parent=23 // pred_region
        %s451 = scalar_lea.sflag [#allocation4], 1
        // Predicated region
        $region303: #{_index_put_jit.1} parent=301 // pred_check
          _
        $region304: #{_index_put_jit.1} parent=301 // pred_check_branch
          %453 = sbr.rel target = $region306
        $region305: #{_index_put_jit.1} parent=301 // pred_region
          // Predicated region
          $region318: #{_index_put_jit.1} parent=305 // pred_check
            _
          $region319: #{_index_put_jit.1} parent=305 // pred_check_branch
            %469 = sbr.rel (0) target = $region321
          $region320: #{_index_put_jit.1} parent=305 // pred_region
            %s471 = ssub.s32 2, 1
            loop: start=0, step=1, limit=1
            $region322: #{_index_put_jit.1} parent=320 // loop_pre_header
              _
            $region323: #{_index_put_jit.1} parent=320 // loop_header
              %s473 = sphi 0, %s477
              %p474 = scmp.ge.s32.totalorder %s473, 1
              %s478 = sphi %s129, %s129
              %s479 = sphi %s128, %s128
            $region324: #{_index_put_jit.1} parent=320 // loop_header_branch
              %476 = sbr.rel (%p474) target = $region328
            $region325: #{_index_put_jit.1} parent=320 // loop_body
              %v480 = vld [vmem:[%s478] sm:%s471]
              %481 = vst [vmem:[%s479] sm:%s471] %v480
            $region326: #{_index_put_jit.1} parent=320 // loop_footer
              %s477 = sadd.s32 1, %s473
            $region327: #{_index_put_jit.1} parent=320 // loop_footer_branch
              %472 = sbr.rel target = $region323
            $region328: #{_index_put_jit.1} parent=320 // loop_exit
              _
          $region321: #{_index_put_jit.1} parent=305 // pred_fallthru
            _
        $region306: #{_index_put_jit.1} parent=301 // pred_fallthru
          _
        // Predicated region
        $region307: #{_index_put_jit.1} parent=301 // pred_check
          _
        $region308: #{_index_put_jit.1} parent=301 // pred_check_branch
          %455 = sbr.rel (0) target = $region310
        $region309: #{_index_put_jit.1} parent=301 // pred_region
          %s457 = ssub.s32 2, 1
          loop: start=0, step=1, limit=1
          $region311: #{_index_put_jit.1} parent=309 // loop_pre_header
            _
          $region312: #{_index_put_jit.1} parent=309 // loop_header
            %s459 = sphi 0, %s463
            %p460 = scmp.ge.s32.totalorder %s459, 1
            %s464 = sphi %s129, %s129
            %s465 = sphi %s128, %s128
          $region313: #{_index_put_jit.1} parent=309 // loop_header_branch
            %462 = sbr.rel (%p460) target = $region317
          $region314: #{_index_put_jit.1} parent=309 // loop_body
            %v466 = vld [vmem:[%s464] sm:%s457]
            %467 = vst [vmem:[%s465] sm:%s457] %v466
          $region315: #{_index_put_jit.1} parent=309 // loop_footer
            %s463 = sadd.s32 1, %s459
          $region316: #{_index_put_jit.1} parent=309 // loop_footer_branch
            %458 = sbr.rel target = $region312
          $region317: #{_index_put_jit.1} parent=309 // loop_exit
            _
        $region310: #{_index_put_jit.1} parent=301 // pred_fallthru
          _
        // Predicated region
        $region329: #{_index_put_jit.1} parent=301 // pred_check
          _
        $region330: #{_index_put_jit.1} parent=301 // pred_check_branch
          %484 = sbr.rel (0) target = $region332
        $region331: #{_index_put_jit.1} parent=301 // pred_region
          %485 = vsyncadd %s451, 16
        $region332: #{_index_put_jit.1} parent=301 // pred_fallthru
          _
      $region302: #{_index_put_jit.1} parent=23 // pred_fallthru
        _
      %p486 = scmp.lt.s32.totalorder %s81, %s77
      // Predicated region
      $region333: #{_index_put_jit.1} parent=23 // pred_check
        %p487 = pneg %p486
      $region334: #{_index_put_jit.1} parent=23 // pred_check_branch
        %489 = sbr.rel (%p487) target = $region336
      $region335: #{_index_put_jit.1} parent=23 // pred_region
        %s490 = scalar_lea.sflag [#allocation4], 2
        // Predicated region
        $region337: #{_index_put_jit.1} parent=335 // pred_check
          _
        $region338: #{_index_put_jit.1} parent=335 // pred_check_branch
          %492 = sbr.rel target = $region340
        $region339: #{_index_put_jit.1} parent=335 // pred_region
          // Predicated region
          $region352: #{_index_put_jit.1} parent=339 // pred_check
            _
          $region353: #{_index_put_jit.1} parent=339 // pred_check_branch
            %508 = sbr.rel (0) target = $region355
          $region354: #{_index_put_jit.1} parent=339 // pred_region
            %s510 = ssub.s32 2, 1
            loop: start=0, step=1, limit=1
            $region356: #{_index_put_jit.1} parent=354 // loop_pre_header
              _
            $region357: #{_index_put_jit.1} parent=354 // loop_header
              %s512 = sphi 0, %s516
              %p513 = scmp.ge.s32.totalorder %s512, 1
              %s517 = sphi %s166, %s166
              %s518 = sphi %s165, %s165
            $region358: #{_index_put_jit.1} parent=354 // loop_header_branch
              %515 = sbr.rel (%p513) target = $region362
            $region359: #{_index_put_jit.1} parent=354 // loop_body
              %v519 = vld [vmem:[%s517] sm:%s510]
              %520 = vst [vmem:[%s518] sm:%s510] %v519
            $region360: #{_index_put_jit.1} parent=354 // loop_footer
              %s516 = sadd.s32 1, %s512
            $region361: #{_index_put_jit.1} parent=354 // loop_footer_branch
              %511 = sbr.rel target = $region357
            $region362: #{_index_put_jit.1} parent=354 // loop_exit
              _
          $region355: #{_index_put_jit.1} parent=339 // pred_fallthru
            _
        $region340: #{_index_put_jit.1} parent=335 // pred_fallthru
          _
        // Predicated region
        $region341: #{_index_put_jit.1} parent=335 // pred_check
          _
        $region342: #{_index_put_jit.1} parent=335 // pred_check_branch
          %494 = sbr.rel (0) target = $region344
        $region343: #{_index_put_jit.1} parent=335 // pred_region
          %s496 = ssub.s32 2, 1
          loop: start=0, step=1, limit=1
          $region345: #{_index_put_jit.1} parent=343 // loop_pre_header
            _
          $region346: #{_index_put_jit.1} parent=343 // loop_header
            %s498 = sphi 0, %s502
            %p499 = scmp.ge.s32.totalorder %s498, 1
            %s503 = sphi %s166, %s166
            %s504 = sphi %s165, %s165
          $region347: #{_index_put_jit.1} parent=343 // loop_header_branch
            %501 = sbr.rel (%p499) target = $region351
          $region348: #{_index_put_jit.1} parent=343 // loop_body
            %v505 = vld [vmem:[%s503] sm:%s496]
            %506 = vst [vmem:[%s504] sm:%s496] %v505
          $region349: #{_index_put_jit.1} parent=343 // loop_footer
            %s502 = sadd.s32 1, %s498
          $region350: #{_index_put_jit.1} parent=343 // loop_footer_branch
            %497 = sbr.rel target = $region346
          $region351: #{_index_put_jit.1} parent=343 // loop_exit
            _
        $region344: #{_index_put_jit.1} parent=335 // pred_fallthru
          _
        // Predicated region
        $region363: #{_index_put_jit.1} parent=335 // pred_check
          _
        $region364: #{_index_put_jit.1} parent=335 // pred_check_branch
          %523 = sbr.rel (0) target = $region366
        $region365: #{_index_put_jit.1} parent=335 // pred_region
          %524 = vsyncadd %s490, 16
        $region366: #{_index_put_jit.1} parent=335 // pred_fallthru
          _
      $region336: #{_index_put_jit.1} parent=23 // pred_fallthru
        _
      %p525 = scmp.lt.s32.totalorder %s83, %s77
      // Predicated region
      $region367: #{_index_put_jit.1} parent=23 // pred_check
        %p526 = pneg %p525
      $region368: #{_index_put_jit.1} parent=23 // pred_check_branch
        %528 = sbr.rel (%p526) target = $region370
      $region369: #{_index_put_jit.1} parent=23 // pred_region
        %s529 = scalar_lea.sflag [#allocation4], 3
        // Predicated region
        $region371: #{_index_put_jit.1} parent=369 // pred_check
          _
        $region372: #{_index_put_jit.1} parent=369 // pred_check_branch
          %531 = sbr.rel target = $region374
        $region373: #{_index_put_jit.1} parent=369 // pred_region
          // Predicated region
          $region386: #{_index_put_jit.1} parent=373 // pred_check
            _
          $region387: #{_index_put_jit.1} parent=373 // pred_check_branch
            %547 = sbr.rel (0) target = $region389
          $region388: #{_index_put_jit.1} parent=373 // pred_region
            %s549 = ssub.s32 2, 1
            loop: start=0, step=1, limit=1
            $region390: #{_index_put_jit.1} parent=388 // loop_pre_header
              _
            $region391: #{_index_put_jit.1} parent=388 // loop_header
              %s551 = sphi 0, %s555
              %p552 = scmp.ge.s32.totalorder %s551, 1
              %s556 = sphi %s203, %s203
              %s557 = sphi %s202, %s202
            $region392: #{_index_put_jit.1} parent=388 // loop_header_branch
              %554 = sbr.rel (%p552) target = $region396
            $region393: #{_index_put_jit.1} parent=388 // loop_body
              %v558 = vld [vmem:[%s556] sm:%s549]
              %559 = vst [vmem:[%s557] sm:%s549] %v558
            $region394: #{_index_put_jit.1} parent=388 // loop_footer
              %s555 = sadd.s32 1, %s551
            $region395: #{_index_put_jit.1} parent=388 // loop_footer_branch
              %550 = sbr.rel target = $region391
            $region396: #{_index_put_jit.1} parent=388 // loop_exit
              _
          $region389: #{_index_put_jit.1} parent=373 // pred_fallthru
            _
        $region374: #{_index_put_jit.1} parent=369 // pred_fallthru
          _
        // Predicated region
        $region375: #{_index_put_jit.1} parent=369 // pred_check
          _
        $region376: #{_index_put_jit.1} parent=369 // pred_check_branch
          %533 = sbr.rel (0) target = $region378
        $region377: #{_index_put_jit.1} parent=369 // pred_region
          %s535 = ssub.s32 2, 1
          loop: start=0, step=1, limit=1
          $region379: #{_index_put_jit.1} parent=377 // loop_pre_header
            _
          $region380: #{_index_put_jit.1} parent=377 // loop_header
            %s537 = sphi 0, %s541
            %p538 = scmp.ge.s32.totalorder %s537, 1
            %s542 = sphi %s203, %s203
            %s543 = sphi %s202, %s202
          $region381: #{_index_put_jit.1} parent=377 // loop_header_branch
            %540 = sbr.rel (%p538) target = $region385
          $region382: #{_index_put_jit.1} parent=377 // loop_body
            %v544 = vld [vmem:[%s542] sm:%s535]
            %545 = vst [vmem:[%s543] sm:%s535] %v544
          $region383: #{_index_put_jit.1} parent=377 // loop_footer
            %s541 = sadd.s32 1, %s537
          $region384: #{_index_put_jit.1} parent=377 // loop_footer_branch
            %536 = sbr.rel target = $region380
          $region385: #{_index_put_jit.1} parent=377 // loop_exit
            _
        $region378: #{_index_put_jit.1} parent=369 // pred_fallthru
          _
        // Predicated region
        $region397: #{_index_put_jit.1} parent=369 // pred_check
          _
        $region398: #{_index_put_jit.1} parent=369 // pred_check_branch
          %562 = sbr.rel (0) target = $region400
        $region399: #{_index_put_jit.1} parent=369 // pred_region
          %563 = vsyncadd %s529, 16
        $region400: #{_index_put_jit.1} parent=369 // pred_fallthru
          _
      $region370: #{_index_put_jit.1} parent=23 // pred_fallthru
        _
      %p564 = scmp.lt.s32.totalorder %s85, %s77
      // Predicated region
      $region401: #{_index_put_jit.1} parent=23 // pred_check
        %p565 = pneg %p564
      $region402: #{_index_put_jit.1} parent=23 // pred_check_branch
        %567 = sbr.rel (%p565) target = $region404
      $region403: #{_index_put_jit.1} parent=23 // pred_region
        %s568 = scalar_lea.sflag [#allocation4], 4
        // Predicated region
        $region405: #{_index_put_jit.1} parent=403 // pred_check
          _
        $region406: #{_index_put_jit.1} parent=403 // pred_check_branch
          %570 = sbr.rel target = $region408
        $region407: #{_index_put_jit.1} parent=403 // pred_region
          // Predicated region
          $region420: #{_index_put_jit.1} parent=407 // pred_check
            _
          $region421: #{_index_put_jit.1} parent=407 // pred_check_branch
            %586 = sbr.rel (0) target = $region423
          $region422: #{_index_put_jit.1} parent=407 // pred_region
            %s588 = ssub.s32 2, 1
            loop: start=0, step=1, limit=1
            $region424: #{_index_put_jit.1} parent=422 // loop_pre_header
              _
            $region425: #{_index_put_jit.1} parent=422 // loop_header
              %s590 = sphi 0, %s594
              %p591 = scmp.ge.s32.totalorder %s590, 1
              %s595 = sphi %s240, %s240
              %s596 = sphi %s239, %s239
            $region426: #{_index_put_jit.1} parent=422 // loop_header_branch
              %593 = sbr.rel (%p591) target = $region430
            $region427: #{_index_put_jit.1} parent=422 // loop_body
              %v597 = vld [vmem:[%s595] sm:%s588]
              %598 = vst [vmem:[%s596] sm:%s588] %v597
            $region428: #{_index_put_jit.1} parent=422 // loop_footer
              %s594 = sadd.s32 1, %s590
            $region429: #{_index_put_jit.1} parent=422 // loop_footer_branch
              %589 = sbr.rel target = $region425
            $region430: #{_index_put_jit.1} parent=422 // loop_exit
              _
          $region423: #{_index_put_jit.1} parent=407 // pred_fallthru
            _
        $region408: #{_index_put_jit.1} parent=403 // pred_fallthru
          _
        // Predicated region
        $region409: #{_index_put_jit.1} parent=403 // pred_check
          _
        $region410: #{_index_put_jit.1} parent=403 // pred_check_branch
          %572 = sbr.rel (0) target = $region412
        $region411: #{_index_put_jit.1} parent=403 // pred_region
          %s574 = ssub.s32 2, 1
          loop: start=0, step=1, limit=1
          $region413: #{_index_put_jit.1} parent=411 // loop_pre_header
            _
          $region414: #{_index_put_jit.1} parent=411 // loop_header
            %s576 = sphi 0, %s580
            %p577 = scmp.ge.s32.totalorder %s576, 1
            %s581 = sphi %s240, %s240
            %s582 = sphi %s239, %s239
          $region415: #{_index_put_jit.1} parent=411 // loop_header_branch
            %579 = sbr.rel (%p577) target = $region419
          $region416: #{_index_put_jit.1} parent=411 // loop_body
            %v583 = vld [vmem:[%s581] sm:%s574]
            %584 = vst [vmem:[%s582] sm:%s574] %v583
          $region417: #{_index_put_jit.1} parent=411 // loop_footer
            %s580 = sadd.s32 1, %s576
          $region418: #{_index_put_jit.1} parent=411 // loop_footer_branch
            %575 = sbr.rel target = $region414
          $region419: #{_index_put_jit.1} parent=411 // loop_exit
            _
        $region412: #{_index_put_jit.1} parent=403 // pred_fallthru
          _
        // Predicated region
        $region431: #{_index_put_jit.1} parent=403 // pred_check
          _
        $region432: #{_index_put_jit.1} parent=403 // pred_check_branch
          %601 = sbr.rel (0) target = $region434
        $region433: #{_index_put_jit.1} parent=403 // pred_region
          %602 = vsyncadd %s568, 16
        $region434: #{_index_put_jit.1} parent=403 // pred_fallthru
          _
      $region404: #{_index_put_jit.1} parent=23 // pred_fallthru
        _
      %p603 = scmp.lt.s32.totalorder %s87, %s77
      // Predicated region
      $region435: #{_index_put_jit.1} parent=23 // pred_check
        %p604 = pneg %p603
      $region436: #{_index_put_jit.1} parent=23 // pred_check_branch
        %606 = sbr.rel (%p604) target = $region438
      $region437: #{_index_put_jit.1} parent=23 // pred_region
        %s607 = scalar_lea.sflag [#allocation4], 5
        // Predicated region
        $region439: #{_index_put_jit.1} parent=437 // pred_check
          _
        $region440: #{_index_put_jit.1} parent=437 // pred_check_branch
          %609 = sbr.rel target = $region442
        $region441: #{_index_put_jit.1} parent=437 // pred_region
          // Predicated region
          $region454: #{_index_put_jit.1} parent=441 // pred_check
            _
          $region455: #{_index_put_jit.1} parent=441 // pred_check_branch
            %625 = sbr.rel (0) target = $region457
          $region456: #{_index_put_jit.1} parent=441 // pred_region
            %s627 = ssub.s32 2, 1
            loop: start=0, step=1, limit=1
            $region458: #{_index_put_jit.1} parent=456 // loop_pre_header
              _
            $region459: #{_index_put_jit.1} parent=456 // loop_header
              %s629 = sphi 0, %s633
              %p630 = scmp.ge.s32.totalorder %s629, 1
              %s634 = sphi %s277, %s277
              %s635 = sphi %s276, %s276
            $region460: #{_index_put_jit.1} parent=456 // loop_header_branch
              %632 = sbr.rel (%p630) target = $region464
            $region461: #{_index_put_jit.1} parent=456 // loop_body
              %v636 = vld [vmem:[%s634] sm:%s627]
              %637 = vst [vmem:[%s635] sm:%s627] %v636
            $region462: #{_index_put_jit.1} parent=456 // loop_footer
              %s633 = sadd.s32 1, %s629
            $region463: #{_index_put_jit.1} parent=456 // loop_footer_branch
              %628 = sbr.rel target = $region459
            $region464: #{_index_put_jit.1} parent=456 // loop_exit
              _
          $region457: #{_index_put_jit.1} parent=441 // pred_fallthru
            _
        $region442: #{_index_put_jit.1} parent=437 // pred_fallthru
          _
        // Predicated region
        $region443: #{_index_put_jit.1} parent=437 // pred_check
          _
        $region444: #{_index_put_jit.1} parent=437 // pred_check_branch
          %611 = sbr.rel (0) target = $region446
        $region445: #{_index_put_jit.1} parent=437 // pred_region
          %s613 = ssub.s32 2, 1
          loop: start=0, step=1, limit=1
          $region447: #{_index_put_jit.1} parent=445 // loop_pre_header
            _
          $region448: #{_index_put_jit.1} parent=445 // loop_header
            %s615 = sphi 0, %s619
            %p616 = scmp.ge.s32.totalorder %s615, 1
            %s620 = sphi %s277, %s277
            %s621 = sphi %s276, %s276
          $region449: #{_index_put_jit.1} parent=445 // loop_header_branch
            %618 = sbr.rel (%p616) target = $region453
          $region450: #{_index_put_jit.1} parent=445 // loop_body
            %v622 = vld [vmem:[%s620] sm:%s613]
            %623 = vst [vmem:[%s621] sm:%s613] %v622
          $region451: #{_index_put_jit.1} parent=445 // loop_footer
            %s619 = sadd.s32 1, %s615
          $region452: #{_index_put_jit.1} parent=445 // loop_footer_branch
            %614 = sbr.rel target = $region448
          $region453: #{_index_put_jit.1} parent=445 // loop_exit
            _
        $region446: #{_index_put_jit.1} parent=437 // pred_fallthru
          _
        // Predicated region
        $region465: #{_index_put_jit.1} parent=437 // pred_check
          _
        $region466: #{_index_put_jit.1} parent=437 // pred_check_branch
          %640 = sbr.rel (0) target = $region468
        $region467: #{_index_put_jit.1} parent=437 // pred_region
          %641 = vsyncadd %s607, 16
        $region468: #{_index_put_jit.1} parent=437 // pred_fallthru
          _
      $region438: #{_index_put_jit.1} parent=23 // pred_fallthru
        _
      %p642 = scmp.lt.s32.totalorder %s89, %s77
      // Predicated region
      $region469: #{_index_put_jit.1} parent=23 // pred_check
        %p643 = pneg %p642
      $region470: #{_index_put_jit.1} parent=23 // pred_check_branch
        %645 = sbr.rel (%p643) target = $region472
      $region471: #{_index_put_jit.1} parent=23 // pred_region
        %s646 = scalar_lea.sflag [#allocation4], 6
        // Predicated region
        $region473: #{_index_put_jit.1} parent=471 // pred_check
          _
        $region474: #{_index_put_jit.1} parent=471 // pred_check_branch
          %648 = sbr.rel target = $region476
        $region475: #{_index_put_jit.1} parent=471 // pred_region
          // Predicated region
          $region488: #{_index_put_jit.1} parent=475 // pred_check
            _
          $region489: #{_index_put_jit.1} parent=475 // pred_check_branch
            %664 = sbr.rel (0) target = $region491
          $region490: #{_index_put_jit.1} parent=475 // pred_region
            %s666 = ssub.s32 2, 1
            loop: start=0, step=1, limit=1
            $region492: #{_index_put_jit.1} parent=490 // loop_pre_header
              _
            $region493: #{_index_put_jit.1} parent=490 // loop_header
              %s668 = sphi 0, %s672
              %p669 = scmp.ge.s32.totalorder %s668, 1
              %s673 = sphi %s314, %s314
              %s674 = sphi %s313, %s313
            $region494: #{_index_put_jit.1} parent=490 // loop_header_branch
              %671 = sbr.rel (%p669) target = $region498
            $region495: #{_index_put_jit.1} parent=490 // loop_body
              %v675 = vld [vmem:[%s673] sm:%s666]
              %676 = vst [vmem:[%s674] sm:%s666] %v675
            $region496: #{_index_put_jit.1} parent=490 // loop_footer
              %s672 = sadd.s32 1, %s668
            $region497: #{_index_put_jit.1} parent=490 // loop_footer_branch
              %667 = sbr.rel target = $region493
            $region498: #{_index_put_jit.1} parent=490 // loop_exit
              _
          $region491: #{_index_put_jit.1} parent=475 // pred_fallthru
            _
        $region476: #{_index_put_jit.1} parent=471 // pred_fallthru
          _
        // Predicated region
        $region477: #{_index_put_jit.1} parent=471 // pred_check
          _
        $region478: #{_index_put_jit.1} parent=471 // pred_check_branch
          %650 = sbr.rel (0) target = $region480
        $region479: #{_index_put_jit.1} parent=471 // pred_region
          %s652 = ssub.s32 2, 1
          loop: start=0, step=1, limit=1
          $region481: #{_index_put_jit.1} parent=479 // loop_pre_header
            _
          $region482: #{_index_put_jit.1} parent=479 // loop_header
            %s654 = sphi 0, %s658
            %p655 = scmp.ge.s32.totalorder %s654, 1
            %s659 = sphi %s314, %s314
            %s660 = sphi %s313, %s313
          $region483: #{_index_put_jit.1} parent=479 // loop_header_branch
            %657 = sbr.rel (%p655) target = $region487
          $region484: #{_index_put_jit.1} parent=479 // loop_body
            %v661 = vld [vmem:[%s659] sm:%s652]
            %662 = vst [vmem:[%s660] sm:%s652] %v661
          $region485: #{_index_put_jit.1} parent=479 // loop_footer
            %s658 = sadd.s32 1, %s654
          $region486: #{_index_put_jit.1} parent=479 // loop_footer_branch
            %653 = sbr.rel target = $region482
          $region487: #{_index_put_jit.1} parent=479 // loop_exit
            _
        $region480: #{_index_put_jit.1} parent=471 // pred_fallthru
          _
        // Predicated region
        $region499: #{_index_put_jit.1} parent=471 // pred_check
          _
        $region500: #{_index_put_jit.1} parent=471 // pred_check_branch
          %679 = sbr.rel (0) target = $region502
        $region501: #{_index_put_jit.1} parent=471 // pred_region
          %680 = vsyncadd %s646, 16
        $region502: #{_index_put_jit.1} parent=471 // pred_fallthru
          _
      $region472: #{_index_put_jit.1} parent=23 // pred_fallthru
        _
      %p681 = scmp.lt.s32.totalorder %s91, %s77
      // Predicated region
      $region503: #{_index_put_jit.1} parent=23 // pred_check
        %p682 = pneg %p681
      $region504: #{_index_put_jit.1} parent=23 // pred_check_branch
        %684 = sbr.rel (%p682) target = $region506
      $region505: #{_index_put_jit.1} parent=23 // pred_region
        %s685 = scalar_lea.sflag [#allocation4], 7
        // Predicated region
        $region507: #{_index_put_jit.1} parent=505 // pred_check
          _
        $region508: #{_index_put_jit.1} parent=505 // pred_check_branch
          %687 = sbr.rel target = $region510
        $region509: #{_index_put_jit.1} parent=505 // pred_region
          // Predicated region
          $region522: #{_index_put_jit.1} parent=509 // pred_check
            _
          $region523: #{_index_put_jit.1} parent=509 // pred_check_branch
            %703 = sbr.rel (0) target = $region525
          $region524: #{_index_put_jit.1} parent=509 // pred_region
            %s705 = ssub.s32 2, 1
            loop: start=0, step=1, limit=1
            $region526: #{_index_put_jit.1} parent=524 // loop_pre_header
              _
            $region527: #{_index_put_jit.1} parent=524 // loop_header
              %s707 = sphi 0, %s711
              %p708 = scmp.ge.s32.totalorder %s707, 1
              %s712 = sphi %s351, %s351
              %s713 = sphi %s350, %s350
            $region528: #{_index_put_jit.1} parent=524 // loop_header_branch
              %710 = sbr.rel (%p708) target = $region532
            $region529: #{_index_put_jit.1} parent=524 // loop_body
              %v714 = vld [vmem:[%s712] sm:%s705]
              %715 = vst [vmem:[%s713] sm:%s705] %v714
            $region530: #{_index_put_jit.1} parent=524 // loop_footer
              %s711 = sadd.s32 1, %s707
            $region531: #{_index_put_jit.1} parent=524 // loop_footer_branch
              %706 = sbr.rel target = $region527
            $region532: #{_index_put_jit.1} parent=524 // loop_exit
              _
          $region525: #{_index_put_jit.1} parent=509 // pred_fallthru
            _
        $region510: #{_index_put_jit.1} parent=505 // pred_fallthru
          _
        // Predicated region
        $region511: #{_index_put_jit.1} parent=505 // pred_check
          _
        $region512: #{_index_put_jit.1} parent=505 // pred_check_branch
          %689 = sbr.rel (0) target = $region514
        $region513: #{_index_put_jit.1} parent=505 // pred_region
          %s691 = ssub.s32 2, 1
          loop: start=0, step=1, limit=1
          $region515: #{_index_put_jit.1} parent=513 // loop_pre_header
            _
          $region516: #{_index_put_jit.1} parent=513 // loop_header
            %s693 = sphi 0, %s697
            %p694 = scmp.ge.s32.totalorder %s693, 1
            %s698 = sphi %s351, %s351
            %s699 = sphi %s350, %s350
          $region517: #{_index_put_jit.1} parent=513 // loop_header_branch
            %696 = sbr.rel (%p694) target = $region521
          $region518: #{_index_put_jit.1} parent=513 // loop_body
            %v700 = vld [vmem:[%s698] sm:%s691]
            %701 = vst [vmem:[%s699] sm:%s691] %v700
          $region519: #{_index_put_jit.1} parent=513 // loop_footer
            %s697 = sadd.s32 1, %s693
          $region520: #{_index_put_jit.1} parent=513 // loop_footer_branch
            %692 = sbr.rel target = $region516
          $region521: #{_index_put_jit.1} parent=513 // loop_exit
            _
        $region514: #{_index_put_jit.1} parent=505 // pred_fallthru
          _
        // Predicated region
        $region533: #{_index_put_jit.1} parent=505 // pred_check
          _
        $region534: #{_index_put_jit.1} parent=505 // pred_check_branch
          %718 = sbr.rel (0) target = $region536
        $region535: #{_index_put_jit.1} parent=505 // pred_region
          %719 = vsyncadd %s685, 16
        $region536: #{_index_put_jit.1} parent=505 // pred_fallthru
          _
      $region506: #{_index_put_jit.1} parent=23 // pred_fallthru
        _
      // Predicated region
      $region537: #{_index_put_jit.1} parent=23 // pred_check
        %p720 = pneg %p409
      $region538: #{_index_put_jit.1} parent=23 // pred_check_branch
        %722 = sbr.rel (%p720) target = $region540
      $region539: #{_index_put_jit.1} parent=23 // pred_region
        %s723 = sshll.u32 %s387, 4
        %724 = dma.done [#allocation4], %s723
      $region540: #{_index_put_jit.1} parent=23 // pred_fallthru
        _
      // Predicated region
      $region541: #{_index_put_jit.1} parent=23 // pred_check
        %p725 = pneg %p447
      $region542: #{_index_put_jit.1} parent=23 // pred_check_branch
        %727 = sbr.rel (%p725) target = $region544
      $region543: #{_index_put_jit.1} parent=23 // pred_region
        %s728 = scalar_lea.sflag [#allocation4], 1
        %s729 = sshll.u32 %s387, 4
        %730 = dma.done %s728, %s729
      $region544: #{_index_put_jit.1} parent=23 // pred_fallthru
        _
      // Predicated region
      $region545: #{_index_put_jit.1} parent=23 // pred_check
        %p731 = pneg %p486
      $region546: #{_index_put_jit.1} parent=23 // pred_check_branch
        %733 = sbr.rel (%p731) target = $region548
      $region547: #{_index_put_jit.1} parent=23 // pred_region
        %s734 = scalar_lea.sflag [#allocation4], 2
        %s735 = sshll.u32 %s387, 4
        %736 = dma.done %s734, %s735
      $region548: #{_index_put_jit.1} parent=23 // pred_fallthru
        _
      // Predicated region
      $region549: #{_index_put_jit.1} parent=23 // pred_check
        %p737 = pneg %p525
      $region550: #{_index_put_jit.1} parent=23 // pred_check_branch
        %739 = sbr.rel (%p737) target = $region552
      $region551: #{_index_put_jit.1} parent=23 // pred_region
        %s740 = scalar_lea.sflag [#allocation4], 3
        %s741 = sshll.u32 %s387, 4
        %742 = dma.done %s740, %s741
      $region552: #{_index_put_jit.1} parent=23 // pred_fallthru
        _
      // Predicated region
      $region553: #{_index_put_jit.1} parent=23 // pred_check
        %p743 = pneg %p564
      $region554: #{_index_put_jit.1} parent=23 // pred_check_branch
        %745 = sbr.rel (%p743) target = $region556
      $region555: #{_index_put_jit.1} parent=23 // pred_region
        %s746 = scalar_lea.sflag [#allocation4], 4
        %s747 = sshll.u32 %s387, 4
        %748 = dma.done %s746, %s747
      $region556: #{_index_put_jit.1} parent=23 // pred_fallthru
        _
      // Predicated region
      $region557: #{_index_put_jit.1} parent=23 // pred_check
        %p749 = pneg %p603
      $region558: #{_index_put_jit.1} parent=23 // pred_check_branch
        %751 = sbr.rel (%p749) target = $region560
      $region559: #{_index_put_jit.1} parent=23 // pred_region
        %s752 = scalar_lea.sflag [#allocation4], 5
        %s753 = sshll.u32 %s387, 4
        %754 = dma.done %s752, %s753
      $region560: #{_index_put_jit.1} parent=23 // pred_fallthru
        _
      // Predicated region
      $region561: #{_index_put_jit.1} parent=23 // pred_check
        %p755 = pneg %p642
      $region562: #{_index_put_jit.1} parent=23 // pred_check_branch
        %757 = sbr.rel (%p755) target = $region564
      $region563: #{_index_put_jit.1} parent=23 // pred_region
        %s758 = scalar_lea.sflag [#allocation4], 6
        %s759 = sshll.u32 %s387, 4
        %760 = dma.done %s758, %s759
      $region564: #{_index_put_jit.1} parent=23 // pred_fallthru
        _
      // Predicated region
      $region565: #{_index_put_jit.1} parent=23 // pred_check
        %p761 = pneg %p681
      $region566: #{_index_put_jit.1} parent=23 // pred_check_branch
        %763 = sbr.rel (%p761) target = $region568
      $region567: #{_index_put_jit.1} parent=23 // pred_region
        %s764 = scalar_lea.sflag [#allocation4], 7
        %s765 = sshll.u32 %s387, 4
        %766 = dma.done %s764, %s765
      $region568: #{_index_put_jit.1} parent=23 // pred_fallthru
        _
    $region24: #{_index_put_jit.1} parent=5 // pred_fallthru
      _
  $region6: #{_index_put_jit.1} parent=0 // loop_footer
    %s23 = sadd.s32 1, %s19
  $region7: #{_index_put_jit.1} parent=0 // loop_footer_branch
    %18 = sbr.rel target = $region3
  $region8: #{_index_put_jit.1} parent=0 // loop_exit
    _
  %767 = vsyncmov [#allocation3]
  %s768 = vpop.sfrf %767
  %p769 = scmp.eq.s32.totalorder %s768, 0
  %p770 = pneg %p769
  %772 = shalt.err (%p770)
  %s773 = scalar_lea.sflag [#allocation3], 1
  %774 = vsyncmov %s773
  %s775 = vpop.sfrf %774
  %p776 = scmp.eq.s32.totalorder %s775, 0
  %p777 = pneg %p776
  %779 = shalt.err (%p777)
  %s780 = scalar_lea.sflag [#allocation3], 2
  %781 = vsyncmov %s780
  %s782 = vpop.sfrf %781
  %p783 = scmp.eq.s32.totalorder %s782, 0
  %p784 = pneg %p783
  %786 = shalt.err (%p784)
  %s787 = scalar_lea.sflag [#allocation3], 3
  %788 = vsyncmov %s787
  %s789 = vpop.sfrf %788
  %p790 = scmp.eq.s32.totalorder %s789, 0
  %p791 = pneg %p790
  %793 = shalt.err (%p791)
  %s794 = scalar_lea.sflag [#allocation3], 4
  %795 = vsyncmov %s794
  %s796 = vpop.sfrf %795
  %p797 = scmp.eq.s32.totalorder %s796, 0
  %p798 = pneg %p797
  %800 = shalt.err (%p798)
  %s801 = scalar_lea.sflag [#allocation3], 5
  %802 = vsyncmov %s801
  %s803 = vpop.sfrf %802
  %p804 = scmp.eq.s32.totalorder %s803, 0
  %p805 = pneg %p804
  %807 = shalt.err (%p805)
  %s808 = scalar_lea.sflag [#allocation3], 6
  %809 = vsyncmov %s808
  %s810 = vpop.sfrf %809
  %p811 = scmp.eq.s32.totalorder %s810, 0
  %p812 = pneg %p811
  %814 = shalt.err (%p812)
  %s815 = scalar_lea.sflag [#allocation3], 7
  %816 = vsyncmov %s815
  %s817 = vpop.sfrf %816
  %p818 = scmp.eq.s32.totalorder %s817, 0
  %p819 = pneg %p818
  %821 = shalt.err (%p819)
  %822 = vsyncmov [#allocation4]
  %s823 = vpop.sfrf %822
  %p824 = scmp.eq.s32.totalorder %s823, 0
  %p825 = pneg %p824
  %827 = shalt.err (%p825)
  %s828 = scalar_lea.sflag [#allocation4], 1
  %829 = vsyncmov %s828
  %s830 = vpop.sfrf %829
  %p831 = scmp.eq.s32.totalorder %s830, 0
  %p832 = pneg %p831
  %834 = shalt.err (%p832)
  %s835 = scalar_lea.sflag [#allocation4], 2
  %836 = vsyncmov %s835
  %s837 = vpop.sfrf %836
  %p838 = scmp.eq.s32.totalorder %s837, 0
  %p839 = pneg %p838
  %841 = shalt.err (%p839)
  %s842 = scalar_lea.sflag [#allocation4], 3
  %843 = vsyncmov %s842
  %s844 = vpop.sfrf %843
  %p845 = scmp.eq.s32.totalorder %s844, 0
  %p846 = pneg %p845
  %848 = shalt.err (%p846)
  %s849 = scalar_lea.sflag [#allocation4], 4
  %850 = vsyncmov %s849
  %s851 = vpop.sfrf %850
  %p852 = scmp.eq.s32.totalorder %s851, 0
  %p853 = pneg %p852
  %855 = shalt.err (%p853)
  %s856 = scalar_lea.sflag [#allocation4], 5
  %857 = vsyncmov %s856
  %s858 = vpop.sfrf %857
  %p859 = scmp.eq.s32.totalorder %s858, 0
  %p860 = pneg %p859
  %862 = shalt.err (%p860)
  %s863 = scalar_lea.sflag [#allocation4], 6
  %864 = vsyncmov %s863
  %s865 = vpop.sfrf %864
  %p866 = scmp.eq.s32.totalorder %s865, 0
  %p867 = pneg %p866
  %869 = shalt.err (%p867)
  %s870 = scalar_lea.sflag [#allocation4], 7
  %871 = vsyncmov %s870
  %s872 = vpop.sfrf %871
  %p873 = scmp.eq.s32.totalorder %s872, 0
  %p874 = pneg %p873
  %876 = shalt.err (%p874)

</llo_original>
